<compile_context>
chip_gen: v6e
topology: v6e:2x2x1
jax: 0.10.0
libtpu: 0.0.40
codegen_flags: <defaults>
</compile_context>

<pallas_src>
import numpy as np

import jax
import jax.numpy as jnp
from jax import lax
from jax.experimental import pallas as pl
from jax.experimental.pallas import tpu as pltpu

IGNORE_INDEX = 0  # Lovasz_loss default ignore class


def _lovasz_kernel(p_row_ref, lbl_row_ref, p_col_ref, lbl_col_ref,
                   loss_ref, pres_ref):
    """One grid step == one class of one image tile (B_TILE images).

    p_row_ref  : [1, 1, B, P] f32  class-c probabilities, pixels on lanes
    lbl_row_ref: [1, B, P]    i32  labels, pixels on lanes
    p_col_ref  : [1, 1, P, B] f32  class-c probabilities, pixels on sublanes
    lbl_col_ref: [1, P, B]    i32  labels, pixels on sublanes
    loss_ref   : [1, 1, B]    f32  present-masked per-(class,image) Lovasz term
    pres_ref   : [1, 1, B]    f32  1.0 iff class c is present in the image
    """
    c = pl.program_id(1)
    B = p_row_ref.shape[2]
    P = p_row_ref.shape[3]

    p_row = p_row_ref[0, 0]          # [B, P]
    lbl_row = lbl_row_ref[0]         # [B, P]
    p_col = p_col_ref[0, 0]          # [P, B]
    lbl_col = lbl_col_ref[0]         # [P, B]

    valid_row = lbl_row != IGNORE_INDEX            # [B, P]
    valid_col = lbl_col != IGNORE_INDEX            # [P, B]
    valid_row_f = valid_row.astype(jnp.float32)

    fg_row = jnp.logical_and(lbl_row == c, valid_row).astype(jnp.float32)  # [B,P]
    fg_col = jnp.logical_and(lbl_col == c, valid_col).astype(jnp.float32)  # [P,B]

    # Errors on valid pixels; invalid pixels get -1 so they sort last and
    # never precede a valid pixel (valid errors lie in [0, 1]).  Row/column
    # versions are the same elementwise computation on the same values, so
    # the float-equality tie test below stays exact.
    e_row = jnp.where(valid_row, jnp.abs(fg_row - p_row), -1.0)   # [B, P]
    e_col = jnp.where(valid_col, jnp.abs(fg_col - p_col), -1.0)   # [P, B]

    # Tie-break mask (pixel j precedes pixel i on equal error iff j <= i),
    # built from two thin iotas instead of two [P,P] integer matrices.
    j_col = lax.broadcasted_iota(jnp.int32, (P, 1), 0)
    i_row = lax.broadcasted_iota(jnp.int32, (1, P), 1)
    tie_le = j_col <= i_row                                        # [P, P] bool

    # MXU-reduction LHS template: row 0 sums cmp to the rank k, row 1 (filled
    # with the per-image foreground mask below) sums to cumsum(fg) at rank k.
    sub8 = lax.broadcasted_iota(jnp.int32, (8, P), 0)
    lhs_base = jnp.where(sub8 == 0, 1.0, 0.0)                      # [8, P] f32

    lane = lax.broadcasted_iota(jnp.int32, (1, B), 1)
    loss_vec = jnp.zeros((1, B), jnp.float32)
    pres_vec = jnp.zeros((1, B), jnp.float32)

    # Static unroll over the image tile: B is small and static slicing keeps
    # the lane-dim slices of the column layout free of dynamic relayouts.
    for i in range(B):
        er = e_row[i:i + 1, :]          # [1, P]
        fr = fg_row[i:i + 1, :]         # [1, P]
        vr = valid_row_f[i:i + 1, :]    # [1, P]
        ec = e_col[:, i:i + 1]          # [P, 1]

        # cmp[j, i] == 1 iff pixel j is placed at or before pixel i in the
        # descending-error sort (exact tie handling -> matches torch.sort;
        # the loss is invariant to the order among exact ties).
        before = jnp.logical_or(ec > er,
                                jnp.logical_and(ec == er, tie_le))   # [P, P]
        cmp = jnp.where(before, 1.0, 0.0).astype(jnp.bfloat16)       # [P, P]

        # Rank k and cumsum(fg) at that rank via a single MXU pass (0/1
        # products accumulated in f32 are exact).
        lhs = jnp.where(sub8 == 1, jnp.broadcast_to(fr, (8, P)),
                        lhs_base).astype(jnp.bfloat16)               # [8, P]
        red = jnp.dot(lhs, cmp, preferred_element_type=jnp.float32)  # [8, P]
        k = red[0:1, :]                  # [1, P] 1-based rank
        cf = red[1:2, :]                 # [1, P] cumsum(fg) at rank k

        gts = jnp.sum(fr)                # |fg| for this (image, class)

        # Lovasz gradient at rank k:  jaccard(k) - jaccard(k-1).
        jacc_cur = 1.0 - (gts - cf) / (gts + (k - cf))        # denom >= 1
        cf_prev = cf - fr
        has_prev = k > 1.5                                     # k >= 2
        denom_prev = jnp.where(has_prev, gts + (k - 1.0 - cf_prev), 1.0)
        jacc_prev = 1.0 - (gts - cf_prev) / denom_prev
        grad = jacc_cur - jnp.where(has_prev, jacc_prev, 0.0)  # [1, P]

        # TODO(synk): pl.reciprocal(..., approx=True) would push these divides
        # to the EUP, but its approximation error is outside this script's
        # tolerance check, so exact division is kept.

        loss_i = jnp.sum(vr * er * grad)                 # scalar
        pres_i = (gts > 0.0).astype(jnp.float32)         # classes='present'

        loss_vec = loss_vec + jnp.where(lane == i, pres_i * loss_i, 0.0)
        pres_vec = pres_vec + jnp.where(lane == i, pres_i, 0.0)

    loss_ref[...] = loss_vec.reshape(1, 1, B)
    pres_ref[...] = pres_vec.reshape(1, 1, B)


@jax.jit
def lovasz_loss(uv_out, uv_label):
    """Forward of Lovasz_loss.

    uv_out:   [N, C, H, W] class probabilities in [0, 1].
    uv_label: [N, C, H, W] one-hot target; integer labels are its argmax over
              the channel axis (torch flatten_probas 3-D-label path).
    Returns the scalar per-image-averaged Lovasz-softmax loss.
    """
    N, C, H, W = uv_out.shape
    P = H * W

    p = uv_out.reshape(N, C, P).astype(jnp.float32)
    labels = jnp.argmax(uv_label.reshape(N, C, P), axis=1).astype(jnp.int32)

    # Image tile per grid step (amortizes per-step pipeline overhead); classes
    # get their own parallel grid axis (keeps both v7x TCs busy at small N).
    b_tile = N if N <= 8 else 8
    n_pad = ((N + b_tile - 1) // b_tile) * b_tile
    nb = n_pad // b_tile
    if n_pad != N:
        p = jnp.pad(p, ((0, n_pad - N), (0, 0), (0, 0)))
        labels = jnp.pad(labels, ((0, n_pad - N), (0, 0)),
                         constant_values=IGNORE_INDEX)

    # Row layout (pixels on lanes) and column layout (pixels on sublanes).
    # Both are dense slabs: no trailing size-1 lane dim, so no 128x VMEM lane
    # padding and no one-element-per-row strided DMA.
    p_row = p.transpose(1, 0, 2).reshape(C, nb, b_tile, P)          # [C,nb,B,P]
    lbl_row = labels.reshape(nb, b_tile, P)                         # [nb,B,P]
    p_col = p.reshape(nb, b_tile, C, P).transpose(2, 0, 3, 1)       # [C,nb,P,B]
    lbl_col = labels.reshape(nb, b_tile, P).transpose(0, 2, 1)      # [nb,P,B]

    loss_cb, pres_cb = pl.pallas_call(
        _lovasz_kernel,
        out_shape=(jax.ShapeDtypeStruct((C, nb, b_tile), jnp.float32),
                   jax.ShapeDtypeStruct((C, nb, b_tile), jnp.float32)),
        grid_spec=pltpu.PrefetchScalarGridSpec(
            num_scalar_prefetch=0,
            grid=(nb, C),
            in_specs=[
                pl.BlockSpec((1, 1, b_tile, P), lambda b, c: (c, b, 0, 0)),
                pl.BlockSpec((1, b_tile, P), lambda b, c: (b, 0, 0)),
                pl.BlockSpec((1, 1, P, b_tile), lambda b, c: (c, b, 0, 0)),
                pl.BlockSpec((1, P, b_tile), lambda b, c: (b, 0, 0)),
            ],
            out_specs=(
                pl.BlockSpec((1, 1, b_tile), lambda b, c: (c, b, 0)),
                pl.BlockSpec((1, 1, b_tile), lambda b, c: (c, b, 0)),
            ),
        ),
        compiler_params=pltpu.CompilerParams(
            dimension_semantics=("parallel", "parallel"),
            vmem_limit_bytes=32 * 1024 * 1024,
        ),
    )(p_row, lbl_row, p_col, lbl_col)

    # classes='present' per-image mean, then per_image=True mean over images.
    loss_ci = loss_cb.reshape(C, n_pad)[:, :N]     # [C, N] (already present-masked)
    pres_ci = pres_cb.reshape(C, n_pad)[:, :N]     # [C, N]
    per_image = jnp.sum(loss_ci, axis=0) / jnp.maximum(jnp.sum(pres_ci, axis=0), 1.0)
    return jnp.mean(per_image)


# ------------------------- pure-numpy reference check ------------------------
def _reference(uv_out, uv_label, ignore=IGNORE_INDEX):
    p = np.asarray(uv_out, dtype=np.float64)
    t = np.asarray(uv_label, dtype=np.float64)
    N, C, H, W = p.shape
    p = p.reshape(N, C, -1)
    labels = np.argmax(t.reshape(N, C, -1), axis=1)
    image_losses = []
    for b in range(N):
        valid = labels[b] != ignore
        vprob = p[b][:, valid]            # [C, V]
        vlab = labels[b][valid]           # [V]
        losses = []
        for c in range(C):
            fg = (vlab == c).astype(np.float64)
            if fg.sum() == 0:
                continue
            errors = np.abs(fg - vprob[c])
            order = np.argsort(-errors, kind="stable")
            e_sorted = errors[order]
            fg_sorted = fg[order]
            gts = fg_sorted.sum()
            inter = gts - np.cumsum(fg_sorted)
            union = gts + np.cumsum(1.0 - fg_sorted)
            jacc = 1.0 - inter / union
            grad = jacc.copy()
            if len(grad) > 1:
                grad[1:] = jacc[1:] - jacc[:-1]
            losses.append(float(np.dot(e_sorted, grad)))
        image_losses.append(float(np.mean(losses)) if losses else 0.0)
    return float(np.mean(image_losses))


if __name__ == "__main__":
    key = jax.random.PRNGKey(0)
    N, C, H, W = 2, 4, 16, 16

    k1, k2 = jax.random.split(key)
    logits = jax.random.normal(k1, (N, C, H, W), dtype=jnp.float32)
    probas = jax.nn.softmax(logits, axis=1)                 # class probabilities
    classes = jax.random.randint(k2, (N, H, W), 0, C)       # class 0 == ignored
    target = jax.nn.one_hot(classes, C, axis=1, dtype=jnp.float32)  # [N,C,H,W]

    loss = lovasz_loss(probas, target)
    loss = jax.block_until_ready(loss)

    ref = _reference(probas, target)
    assert np.isclose(float(loss), ref, rtol=1e-4, atol=5e-4), (float(loss), ref)

    print("KERNEL_OK")
</pallas_src>

<mosaic_0001>
module attributes {stable_mosaic.version = 11 : i64} {
  func.func @_lovasz_kernel(%arg0: i32, %arg1: i32, %arg2: memref<1x1x2x256xf32, #tpu.memory_space<vmem>>, %arg3: memref<1x2x256xi32, #tpu.memory_space<vmem>>, %arg4: memref<1x1x256x2xf32, #tpu.memory_space<vmem>>, %arg5: memref<1x256x2xi32, #tpu.memory_space<vmem>>, %arg6: memref<1x1x2xf32, #tpu.memory_space<vmem>>, %arg7: memref<1x1x2xf32, #tpu.memory_space<vmem>>) attributes {dimension_semantics = [#tpu.dimension_semantics<parallel>, #tpu.dimension_semantics<parallel>], iteration_bounds = array<i64: 1, 4>, scalar_prefetch = 0 : i64, scratch_operands = 0 : i64, tpu.core_type = #tpu.core_type<tc>, window_params = [{transform_indices = @transform_0, window_bounds = array<i64: 1, 1, 2, 256>}, {transform_indices = @transform_1, window_bounds = array<i64: 1, 2, 256>}, {transform_indices = @transform_2, window_bounds = array<i64: 1, 1, 256, 2>}, {transform_indices = @transform_3, window_bounds = array<i64: 1, 256, 2>}, {transform_indices = @transform_4, window_bounds = array<i64: 1, 1, 2>}, {transform_indices = @transform_5, window_bounds = array<i64: 1, 1, 2>}]} {
    %c0 = arith.constant 0 : index
    %c0_0 = arith.constant 0 : index
    %c0_1 = arith.constant 0 : index
    %c0_2 = arith.constant 0 : index
    %0 = vector.load %arg2[%c0, %c0_0, %c0_1, %c0_2] : memref<1x1x2x256xf32, #tpu.memory_space<vmem>>, vector<1x1x2x256xf32>
    %1 = vector.shape_cast %0 : vector<1x1x2x256xf32> to vector<2x256xf32>
    %c0_3 = arith.constant 0 : index
    %c0_4 = arith.constant 0 : index
    %c0_5 = arith.constant 0 : index
    %2 = vector.load %arg3[%c0_3, %c0_4, %c0_5] : memref<1x2x256xi32, #tpu.memory_space<vmem>>, vector<1x2x256xi32>
    %3 = vector.shape_cast %2 : vector<1x2x256xi32> to vector<2x256xi32>
    %c0_6 = arith.constant 0 : index
    %c0_7 = arith.constant 0 : index
    %c0_8 = arith.constant 0 : index
    %c0_9 = arith.constant 0 : index
    %4 = vector.load %arg4[%c0_6, %c0_7, %c0_8, %c0_9] : memref<1x1x256x2xf32, #tpu.memory_space<vmem>>, vector<1x1x256x2xf32>
    %5 = vector.shape_cast %4 : vector<1x1x256x2xf32> to vector<256x2xf32>
    %c0_10 = arith.constant 0 : index
    %c0_11 = arith.constant 0 : index
    %c0_12 = arith.constant 0 : index
    %6 = vector.load %arg5[%c0_10, %c0_11, %c0_12] : memref<1x256x2xi32, #tpu.memory_space<vmem>>, vector<1x256x2xi32>
    %7 = vector.shape_cast %6 : vector<1x256x2xi32> to vector<256x2xi32>
    %c0_i32 = arith.constant 0 : i32
    %8 = vector.broadcast %c0_i32 : i32 to vector<2x256xi32>
    %9 = arith.cmpi ne, %3, %8 : vector<2x256xi32>
    %c0_i32_13 = arith.constant 0 : i32
    %10 = vector.broadcast %c0_i32_13 : i32 to vector<256x2xi32>
    %11 = arith.cmpi ne, %7, %10 : vector<256x2xi32>
    %12 = arith.extui %9 : vector<2x256xi1> to vector<2x256xi32>
    %13 = arith.sitofp %12 : vector<2x256xi32> to vector<2x256xf32>
    %14 = vector.broadcast %arg1 : i32 to vector<2x256xi32>
    %15 = arith.cmpi eq, %3, %14 : vector<2x256xi32>
    %16 = arith.andi %15, %9 : vector<2x256xi1>
    %17 = arith.extui %16 : vector<2x256xi1> to vector<2x256xi32>
    %18 = arith.sitofp %17 : vector<2x256xi32> to vector<2x256xf32>
    %19 = vector.broadcast %arg1 : i32 to vector<256x2xi32>
    %20 = arith.cmpi eq, %7, %19 : vector<256x2xi32>
    %21 = arith.andi %20, %11 : vector<256x2xi1>
    %22 = arith.extui %21 : vector<256x2xi1> to vector<256x2xi32>
    %23 = arith.sitofp %22 : vector<256x2xi32> to vector<256x2xf32>
    %24 = arith.subf %18, %1 : vector<2x256xf32>
    %25 = math.absf %24 : vector<2x256xf32>
    %cst = arith.constant -1.000000e+00 : f32
    %26 = vector.broadcast %cst : f32 to vector<2x256xf32>
    %27 = arith.select %9, %25, %26 : vector<2x256xi1>, vector<2x256xf32>
    %28 = arith.subf %23, %5 : vector<256x2xf32>
    %29 = math.absf %28 : vector<256x2xf32>
    %cst_14 = arith.constant -1.000000e+00 : f32
    %30 = vector.broadcast %cst_14 : f32 to vector<256x2xf32>
    %31 = arith.select %11, %29, %30 : vector<256x2xi1>, vector<256x2xf32>
    %32 = tpu.iota {dimensions = array<i32: 0>} : vector<256x1xi32>
    %33 = tpu.iota {dimensions = array<i32: 1>} : vector<1x256xi32>
    %34 = vector.broadcast %32 : vector<256x1xi32> to vector<256x256xi32>
    %35 = vector.broadcast %33 : vector<1x256xi32> to vector<256x256xi32>
    %36 = arith.cmpi sle, %34, %35 : vector<256x256xi32>
    %37 = tpu.iota {dimensions = array<i32: 0>} : vector<8x256xi32>
    %c0_i32_15 = arith.constant 0 : i32
    %38 = vector.broadcast %c0_i32_15 : i32 to vector<8x256xi32>
    %39 = arith.cmpi eq, %37, %38 : vector<8x256xi32>
    %cst_16 = arith.constant 1.000000e+00 : f32
    %cst_17 = arith.constant 0.000000e+00 : f32
    %40 = vector.broadcast %cst_16 : f32 to vector<8x256xf32>
    %41 = vector.broadcast %cst_17 : f32 to vector<8x256xf32>
    %42 = arith.select %39, %40, %41 : vector<8x256xi1>, vector<8x256xf32>
    %43 = tpu.iota {dimensions = array<i32: 1>} : vector<1x2xi32>
    %cst_18 = arith.constant 0.000000e+00 : f32
    %44 = vector.broadcast %cst_18 : f32 to vector<1x2xf32>
    %cst_19 = arith.constant 0.000000e+00 : f32
    %45 = vector.broadcast %cst_19 : f32 to vector<1x2xf32>
    %46 = vector.extract_strided_slice %27 {offsets = [0, 0], sizes = [1, 256], strides = [1, 1]} : vector<2x256xf32> to vector<1x256xf32>
    %47 = vector.extract_strided_slice %18 {offsets = [0, 0], sizes = [1, 256], strides = [1, 1]} : vector<2x256xf32> to vector<1x256xf32>
    %48 = vector.extract_strided_slice %13 {offsets = [0, 0], sizes = [1, 256], strides = [1, 1]} : vector<2x256xf32> to vector<1x256xf32>
    %49 = vector.extract_strided_slice %31 {offsets = [0, 0], sizes = [256, 1], strides = [1, 1]} : vector<256x2xf32> to vector<256x1xf32>
    %50 = vector.broadcast %49 : vector<256x1xf32> to vector<256x256xf32>
    %51 = vector.broadcast %46 : vector<1x256xf32> to vector<256x256xf32>
    %52 = arith.cmpf ogt, %50, %51 : vector<256x256xf32>
    %53 = vector.broadcast %49 : vector<256x1xf32> to vector<256x256xf32>
    %54 = vector.broadcast %46 : vector<1x256xf32> to vector<256x256xf32>
    %55 = arith.cmpf oeq, %53, %54 : vector<256x256xf32>
    %56 = arith.andi %55, %36 : vector<256x256xi1>
    %57 = arith.ori %52, %56 : vector<256x256xi1>
    %cst_20 = arith.constant 1.000000e+00 : f32
    %cst_21 = arith.constant 0.000000e+00 : f32
    %58 = vector.broadcast %cst_20 : f32 to vector<256x256xf32>
    %59 = vector.broadcast %cst_21 : f32 to vector<256x256xf32>
    %60 = arith.select %57, %58, %59 : vector<256x256xi1>, vector<256x256xf32>
    %61 = arith.truncf %60 : vector<256x256xf32> to vector<256x256xbf16>
    %c1_i32 = arith.constant 1 : i32
    %62 = vector.broadcast %c1_i32 : i32 to vector<8x256xi32>
    %63 = arith.cmpi eq, %37, %62 : vector<8x256xi32>
    %64 = vector.shape_cast %47 : vector<1x256xf32> to vector<1x256xf32>
    %65 = vector.broadcast %64 : vector<1x256xf32> to vector<8x256xf32>
    %66 = arith.select %63, %65, %42 : vector<8x256xi1>, vector<8x256xf32>
    %67 = arith.truncf %66 : vector<8x256xf32> to vector<8x256xbf16>
    %cst_22 = arith.constant dense<0.000000e+00> : vector<8x256xf32>
    %68 = tpu.matmul %67, %61, %cst_22 {dimension_numbers = #tpu.dot_dimension_numbers<[1], [0], [0], [1], [0, 0, 1, 1], [], []>} : vector<8x256xbf16>, vector<256x256xbf16>, vector<8x256xf32> -> vector<8x256xf32>
    %69 = vector.extract_strided_slice %68 {offsets = [0, 0], sizes = [1, 256], strides = [1, 1]} : vector<8x256xf32> to vector<1x256xf32>
    %70 = vector.extract_strided_slice %68 {offsets = [1, 0], sizes = [1, 256], strides = [1, 1]} : vector<8x256xf32> to vector<1x256xf32>
    %71 = vector.shape_cast %47 : vector<1x256xf32> to vector<1x1x256xf32>
    %cst_23 = arith.constant dense<0.000000e+00> : vector<1xf32>
    %72 = vector.multi_reduction <add>, %71, %cst_23 [1, 2] : vector<1x1x256xf32> to vector<1xf32>
    %73 = vector.shape_cast %72 : vector<1xf32> to vector<1x1x1xf32>
    %74 = vector.extract %73[0, 0, 0] : f32 from vector<1x1x1xf32>
    %75 = vector.broadcast %74 : f32 to vector<1x256xf32>
    %76 = arith.subf %75, %70 : vector<1x256xf32>
    %77 = arith.subf %69, %70 : vector<1x256xf32>
    %78 = vector.broadcast %74 : f32 to vector<1x256xf32>
    %79 = arith.addf %78, %77 : vector<1x256xf32>
    %80 = arith.divf %76, %79 : vector<1x256xf32>
    %cst_24 = arith.constant 1.000000e+00 : f32
    %81 = vector.broadcast %cst_24 : f32 to vector<1x256xf32>
    %82 = arith.subf %81, %80 : vector<1x256xf32>
    %83 = arith.subf %70, %47 : vector<1x256xf32>
    %cst_25 = arith.constant 1.500000e+00 : f32
    %84 = vector.broadcast %cst_25 : f32 to vector<1x256xf32>
    %85 = arith.cmpf ogt, %69, %84 : vector<1x256xf32>
    %cst_26 = arith.constant 1.000000e+00 : f32
    %86 = vector.broadcast %cst_26 : f32 to vector<1x256xf32>
    %87 = arith.subf %69, %86 : vector<1x256xf32>
    %88 = arith.subf %87, %83 : vector<1x256xf32>
    %89 = vector.broadcast %74 : f32 to vector<1x256xf32>
    %90 = arith.addf %89, %88 : vector<1x256xf32>
    %cst_27 = arith.constant 1.000000e+00 : f32
    %91 = vector.broadcast %cst_27 : f32 to vector<1x256xf32>
    %92 = arith.select %85, %90, %91 : vector<1x256xi1>, vector<1x256xf32>
    %93 = vector.broadcast %74 : f32 to vector<1x256xf32>
    %94 = arith.subf %93, %83 : vector<1x256xf32>
    %95 = arith.divf %94, %92 : vector<1x256xf32>
    %cst_28 = arith.constant 1.000000e+00 : f32
    %96 = vector.broadcast %cst_28 : f32 to vector<1x256xf32>
    %97 = arith.subf %96, %95 : vector<1x256xf32>
    %cst_29 = arith.constant 0.000000e+00 : f32
    %98 = vector.broadcast %cst_29 : f32 to vector<1x256xf32>
    %99 = arith.select %85, %97, %98 : vector<1x256xi1>, vector<1x256xf32>
    %100 = arith.subf %82, %99 : vector<1x256xf32>
    %101 = arith.mulf %48, %46 : vector<1x256xf32>
    %102 = arith.mulf %101, %100 : vector<1x256xf32>
    %103 = vector.shape_cast %102 : vector<1x256xf32> to vector<1x1x256xf32>
    %cst_30 = arith.constant dense<0.000000e+00> : vector<1xf32>
    %104 = vector.multi_reduction <add>, %103, %cst_30 [1, 2] : vector<1x1x256xf32> to vector<1xf32>
    %105 = vector.shape_cast %104 : vector<1xf32> to vector<1x1x1xf32>
    %106 = vector.extract %105[0, 0, 0] : f32 from vector<1x1x1xf32>
    %cst_31 = arith.constant 0.000000e+00 : f32
    %107 = arith.cmpf ogt, %74, %cst_31 : f32
    %108 = arith.extui %107 : i1 to i32
    %109 = arith.sitofp %108 : i32 to f32
    %c0_i32_32 = arith.constant 0 : i32
    %110 = vector.broadcast %c0_i32_32 : i32 to vector<1x2xi32>
    %111 = arith.cmpi eq, %43, %110 : vector<1x2xi32>
    %112 = arith.mulf %109, %106 : f32
    %cst_33 = arith.constant 0.000000e+00 : f32
    %113 = vector.broadcast %112 : f32 to vector<1x2xf32>
    %114 = vector.broadcast %cst_33 : f32 to vector<1x2xf32>
    %115 = arith.select %111, %113, %114 : vector<1x2xi1>, vector<1x2xf32>
    %116 = arith.addf %44, %115 : vector<1x2xf32>
    %c0_i32_34 = arith.constant 0 : i32
    %117 = vector.broadcast %c0_i32_34 : i32 to vector<1x2xi32>
    %118 = arith.cmpi eq, %43, %117 : vector<1x2xi32>
    %cst_35 = arith.constant 0.000000e+00 : f32
    %119 = vector.broadcast %109 : f32 to vector<1x2xf32>
    %120 = vector.broadcast %cst_35 : f32 to vector<1x2xf32>
    %121 = arith.select %118, %119, %120 : vector<1x2xi1>, vector<1x2xf32>
    %122 = arith.addf %45, %121 : vector<1x2xf32>
    %123 = vector.extract_strided_slice %27 {offsets = [1, 0], sizes = [1, 256], strides = [1, 1]} : vector<2x256xf32> to vector<1x256xf32>
    %124 = vector.extract_strided_slice %18 {offsets = [1, 0], sizes = [1, 256], strides = [1, 1]} : vector<2x256xf32> to vector<1x256xf32>
    %125 = vector.extract_strided_slice %13 {offsets = [1, 0], sizes = [1, 256], strides = [1, 1]} : vector<2x256xf32> to vector<1x256xf32>
    %126 = vector.extract_strided_slice %31 {offsets = [0, 1], sizes = [256, 1], strides = [1, 1]} : vector<256x2xf32> to vector<256x1xf32>
    %127 = vector.broadcast %126 : vector<256x1xf32> to vector<256x256xf32>
    %128 = vector.broadcast %123 : vector<1x256xf32> to vector<256x256xf32>
    %129 = arith.cmpf ogt, %127, %128 : vector<256x256xf32>
    %130 = vector.broadcast %126 : vector<256x1xf32> to vector<256x256xf32>
    %131 = vector.broadcast %123 : vector<1x256xf32> to vector<256x256xf32>
    %132 = arith.cmpf oeq, %130, %131 : vector<256x256xf32>
    %133 = arith.andi %132, %36 : vector<256x256xi1>
    %134 = arith.ori %129, %133 : vector<256x256xi1>
    %cst_36 = arith.constant 1.000000e+00 : f32
    %cst_37 = arith.constant 0.000000e+00 : f32
    %135 = vector.broadcast %cst_36 : f32 to vector<256x256xf32>
    %136 = vector.broadcast %cst_37 : f32 to vector<256x256xf32>
    %137 = arith.select %134, %135, %136 : vector<256x256xi1>, vector<256x256xf32>
    %138 = arith.truncf %137 : vector<256x256xf32> to vector<256x256xbf16>
    %c1_i32_38 = arith.constant 1 : i32
    %139 = vector.broadcast %c1_i32_38 : i32 to vector<8x256xi32>
    %140 = arith.cmpi eq, %37, %139 : vector<8x256xi32>
    %141 = vector.shape_cast %124 : vector<1x256xf32> to vector<1x256xf32>
    %142 = vector.broadcast %141 : vector<1x256xf32> to vector<8x256xf32>
    %143 = arith.select %140, %142, %42 : vector<8x256xi1>, vector<8x256xf32>
    %144 = arith.truncf %143 : vector<8x256xf32> to vector<8x256xbf16>
    %cst_39 = arith.constant dense<0.000000e+00> : vector<8x256xf32>
    %145 = tpu.matmul %144, %138, %cst_39 {dimension_numbers = #tpu.dot_dimension_numbers<[1], [0], [0], [1], [0, 0, 1, 1], [], []>} : vector<8x256xbf16>, vector<256x256xbf16>, vector<8x256xf32> -> vector<8x256xf32>
    %146 = vector.extract_strided_slice %145 {offsets = [0, 0], sizes = [1, 256], strides = [1, 1]} : vector<8x256xf32> to vector<1x256xf32>
    %147 = vector.extract_strided_slice %145 {offsets = [1, 0], sizes = [1, 256], strides = [1, 1]} : vector<8x256xf32> to vector<1x256xf32>
    %148 = vector.shape_cast %124 : vector<1x256xf32> to vector<1x1x256xf32>
    %cst_40 = arith.constant dense<0.000000e+00> : vector<1xf32>
    %149 = vector.multi_reduction <add>, %148, %cst_40 [1, 2] : vector<1x1x256xf32> to vector<1xf32>
    %150 = vector.shape_cast %149 : vector<1xf32> to vector<1x1x1xf32>
    %151 = vector.extract %150[0, 0, 0] : f32 from vector<1x1x1xf32>
    %152 = vector.broadcast %151 : f32 to vector<1x256xf32>
    %153 = arith.subf %152, %147 : vector<1x256xf32>
    %154 = arith.subf %146, %147 : vector<1x256xf32>
    %155 = vector.broadcast %151 : f32 to vector<1x256xf32>
    %156 = arith.addf %155, %154 : vector<1x256xf32>
    %157 = arith.divf %153, %156 : vector<1x256xf32>
    %cst_41 = arith.constant 1.000000e+00 : f32
    %158 = vector.broadcast %cst_41 : f32 to vector<1x256xf32>
    %159 = arith.subf %158, %157 : vector<1x256xf32>
    %160 = arith.subf %147, %124 : vector<1x256xf32>
    %cst_42 = arith.constant 1.500000e+00 : f32
    %161 = vector.broadcast %cst_42 : f32 to vector<1x256xf32>
    %162 = arith.cmpf ogt, %146, %161 : vector<1x256xf32>
    %cst_43 = arith.constant 1.000000e+00 : f32
    %163 = vector.broadcast %cst_43 : f32 to vector<1x256xf32>
    %164 = arith.subf %146, %163 : vector<1x256xf32>
    %165 = arith.subf %164, %160 : vector<1x256xf32>
    %166 = vector.broadcast %151 : f32 to vector<1x256xf32>
    %167 = arith.addf %166, %165 : vector<1x256xf32>
    %cst_44 = arith.constant 1.000000e+00 : f32
    %168 = vector.broadcast %cst_44 : f32 to vector<1x256xf32>
    %169 = arith.select %162, %167, %168 : vector<1x256xi1>, vector<1x256xf32>
    %170 = vector.broadcast %151 : f32 to vector<1x256xf32>
    %171 = arith.subf %170, %160 : vector<1x256xf32>
    %172 = arith.divf %171, %169 : vector<1x256xf32>
    %cst_45 = arith.constant 1.000000e+00 : f32
    %173 = vector.broadcast %cst_45 : f32 to vector<1x256xf32>
    %174 = arith.subf %173, %172 : vector<1x256xf32>
    %cst_46 = arith.constant 0.000000e+00 : f32
    %175 = vector.broadcast %cst_46 : f32 to vector<1x256xf32>
    %176 = arith.select %162, %174, %175 : vector<1x256xi1>, vector<1x256xf32>
    %177 = arith.subf %159, %176 : vector<1x256xf32>
    %178 = arith.mulf %125, %123 : vector<1x256xf32>
    %179 = arith.mulf %178, %177 : vector<1x256xf32>
    %180 = vector.shape_cast %179 : vector<1x256xf32> to vector<1x1x256xf32>
    %cst_47 = arith.constant dense<0.000000e+00> : vector<1xf32>
    %181 = vector.multi_reduction <add>, %180, %cst_47 [1, 2] : vector<1x1x256xf32> to vector<1xf32>
    %182 = vector.shape_cast %181 : vector<1xf32> to vector<1x1x1xf32>
    %183 = vector.extract %182[0, 0, 0] : f32 from vector<1x1x1xf32>
    %cst_48 = arith.constant 0.000000e+00 : f32
    %184 = arith.cmpf ogt, %151, %cst_48 : f32
    %185 = arith.extui %184 : i1 to i32
    %186 = arith.sitofp %185 : i32 to f32
    %c1_i32_49 = arith.constant 1 : i32
    %187 = vector.broadcast %c1_i32_49 : i32 to vector<1x2xi32>
    %188 = arith.cmpi eq, %43, %187 : vector<1x2xi32>
    %189 = arith.mulf %186, %183 : f32
    %cst_50 = arith.constant 0.000000e+00 : f32
    %190 = vector.broadcast %189 : f32 to vector<1x2xf32>
    %191 = vector.broadcast %cst_50 : f32 to vector<1x2xf32>
    %192 = arith.select %188, %190, %191 : vector<1x2xi1>, vector<1x2xf32>
    %193 = arith.addf %116, %192 : vector<1x2xf32>
    %c1_i32_51 = arith.constant 1 : i32
    %194 = vector.broadcast %c1_i32_51 : i32 to vector<1x2xi32>
    %195 = arith.cmpi eq, %43, %194 : vector<1x2xi32>
    %cst_52 = arith.constant 0.000000e+00 : f32
    %196 = vector.broadcast %186 : f32 to vector<1x2xf32>
    %197 = vector.broadcast %cst_52 : f32 to vector<1x2xf32>
    %198 = arith.select %195, %196, %197 : vector<1x2xi1>, vector<1x2xf32>
    %199 = arith.addf %122, %198 : vector<1x2xf32>
    %200 = vector.shape_cast %193 : vector<1x2xf32> to vector<1x1x2xf32>
    %c0_53 = arith.constant 0 : index
    %c0_54 = arith.constant 0 : index
    %c0_55 = arith.constant 0 : index
    %201 = vector.load %arg6[%c0_53, %c0_54, %c0_55] : memref<1x1x2xf32, #tpu.memory_space<vmem>>, vector<1x1x2xf32>
    tpu.vector_store %arg6[%c0_53, %c0_54, %c0_55], %200 {strides = array<i32>} : memref<1x1x2xf32, #tpu.memory_space<vmem>>, vector<1x1x2xf32>,
    %202 = vector.shape_cast %199 : vector<1x2xf32> to vector<1x1x2xf32>
    %c0_56 = arith.constant 0 : index
    %c0_57 = arith.constant 0 : index
    %c0_58 = arith.constant 0 : index
    %203 = vector.load %arg7[%c0_56, %c0_57, %c0_58] : memref<1x1x2xf32, #tpu.memory_space<vmem>>, vector<1x1x2xf32>
    tpu.vector_store %arg7[%c0_56, %c0_57, %c0_58], %202 {strides = array<i32>} : memref<1x1x2xf32, #tpu.memory_space<vmem>>, vector<1x1x2xf32>,
    return
  }
  func.func @transform_0(%arg0: i32, %arg1: i32) -> (i32, i32, i32, i32) {
    %c0_i32 = arith.constant 0 : i32
    %c0_i32_0 = arith.constant 0 : i32
    %c0_i32_1 = arith.constant 0 : i32
    return %arg1, %arg0, %c0_i32, %c0_i32_0 : i32, i32, i32, i32
  }
  func.func @transform_1(%arg0: i32, %arg1: i32) -> (i32, i32, i32) {
    %c0_i32 = arith.constant 0 : i32
    %c0_i32_0 = arith.constant 0 : i32
    %c0_i32_1 = arith.constant 0 : i32
    return %arg0, %c0_i32, %c0_i32_0 : i32, i32, i32
  }
  func.func @transform_2(%arg0: i32, %arg1: i32) -> (i32, i32, i32, i32) {
    %c0_i32 = arith.constant 0 : i32
    %c0_i32_0 = arith.constant 0 : i32
    %c0_i32_1 = arith.constant 0 : i32
    return %arg1, %arg0, %c0_i32, %c0_i32_0 : i32, i32, i32, i32
  }
  func.func @transform_3(%arg0: i32, %arg1: i32) -> (i32, i32, i32) {
    %c0_i32 = arith.constant 0 : i32
    %c0_i32_0 = arith.constant 0 : i32
    %c0_i32_1 = arith.constant 0 : i32
    return %arg0, %c0_i32, %c0_i32_0 : i32, i32, i32
  }
  func.func @transform_4(%arg0: i32, %arg1: i32) -> (i32, i32, i32) {
    %c0_i32 = arith.constant 0 : i32
    %c0_i32_0 = arith.constant 0 : i32
    return %arg1, %arg0, %c0_i32 : i32, i32, i32
  }
  func.func @transform_5(%arg0: i32, %arg1: i32) -> (i32, i32, i32) {
    %c0_i32 = arith.constant 0 : i32
    %c0_i32_0 = arith.constant 0 : i32
    return %arg1, %arg0, %c0_i32 : i32, i32, i32
  }
}

</mosaic_0001>

<llo_original>
// kernel: lovasz_loss.1
$region0: #{lovasz_loss.1}
  #allocation0 [shape = 'u32[]', space=smem, size = 0x4, offset = 0x4, fixed_abs, tag = 'smem constant byte address 0x4 - core index']
  #allocation1 [shape = 'u32[144,128]{1,0:T(1,128)}', space=vmem, size = 0x12000, scoped, tag = 'internal scratch']
  %s0 = inlined_call_operand.vmem [shape: f32[4,1,2,256], index: 0, kind: input, shape index: {}]
  %s1 = inlined_call_operand.vmem [shape: s32[1,2,256], index: 1, kind: input, shape index: {}]
  %s2 = inlined_call_operand.vmem [shape: f32[4,1,256,2], index: 2, kind: input, shape index: {}]
  %s3 = inlined_call_operand.vmem [shape: s32[1,256,2], index: 3, kind: input, shape index: {}]
  %s4 = inlined_call_operand.vmem [shape: f32[4,1,2], index: 4, kind: output, shape index: {0}]
  %s5 = inlined_call_operand.vmem [shape: f32[4,1,2], index: 5, kind: output, shape index: {1}]
  %6 = xla_tuple %s4, %s5
  %s7 = sld [smem:[#allocation0]]
  $region57: #{lovasz_loss.1} parent=0
    _
  %s9 = ssub.s32 1, %s7
  %s10 = scalar_select 0, %s9, %s7
  loop: start=0, step=1, limit=6
  $region2: #{lovasz_loss.1} parent=0 // loop_pre_header
    _
  $region3: #{lovasz_loss.1} parent=0 // loop_header
    %s12 = sphi 0, %s16
    %p13 = scmp.ge.s32.totalorder %s12, 6
    %s19 = sphi 0, %s31
    %s20 = sphi 0, %s27
    %s21 = sphi 0, %s19
    %s22 = sphi 0, %s20
    %s23 = sphi 0, %s21
    %s24 = sphi 0, %s22
    %s36 = sphi 0, %s38
    %s39 = sphi 0, %s36
    %s40 = sphi 0, %s39
    %s56 = sphi 0, %s40
    %s62 = sphi 0, %s64
    %s65 = sphi 0, %s62
    %s66 = sphi 0, %s65
    %s82 = sphi 0, %s66
    %s90 = sphi 0, %s92
    %s93 = sphi 0, %s90
    %s94 = sphi 0, %s93
    %s110 = sphi 0, %s94
    %s116 = sphi 0, %s118
    %s119 = sphi 0, %s116
    %s120 = sphi 0, %s119
    %s136 = sphi 0, %s120
    %s144 = sphi 0, %s146
    %s147 = sphi 0, %s144
    %s148 = sphi 0, %s147
    %s164 = sphi 0, %s148
    %s172 = sphi 0, %s174
    %s175 = sphi 0, %s172
    %s176 = sphi 0, %s175
    %s192 = sphi 0, %s176
  $region4: #{lovasz_loss.1} parent=0 // loop_header_branch
    %15 = sbr.rel (%p13) target = $region8
  $region5: #{lovasz_loss.1} parent=0 // loop_body
    %s17 = ssub.s32 %s12, 1
    %s18 = ssub.s32 %s12, 2
    %s25 = sadd.s32 1, %s20
    %p26 = scmp.ge.s32.totalorder %s25, 4
    %s27 = scalar_select %p26, 0, %s25
    %s28 = sadd.s32 1, %s19
    %s29 = scalar_select %p26, %s28, %s19
    %p30 = scmp.ge.s32.totalorder %s29, 1
    %s31 = scalar_select %p30, 0, %s29
    %s32 = ssub.s32 %s20, %s27
    %s33 = ssub.s32 %s19, %s31
    %s34 = sor.u32 %s32, %s33
    %p35 = scmp.eq.s32.totalorder %s34, 0
    %s37 = sadd.s32 %s36, 1
    %s38 = scalar_select %p35, %s36, %s37
    %p41 = pneg %p35
    %p42 = scmp.eq.s32.totalorder %s12, 3
    %p43 = por %p41, %p42
    %p44 = scmp.ne.s32.totalorder %s36, %s39
    %p45 = scmp.eq.s32.totalorder %s12, 0
    %p46 = por %p44, %p45
    %p47 = scmp.ne.s32.totalorder %s36, %s39
    %p48 = scmp.eq.s32.totalorder %s17, 3
    %p49 = por %p47, %p48
    %p50 = scmp.ne.s32.totalorder %s39, %s40
    %p51 = scmp.eq.s32.totalorder %s17, 0
    %p52 = por %p50, %p51
    %p53 = scmp.ne.s32.totalorder %s39, %s40
    %p54 = scmp.eq.s32.totalorder %s18, 3
    %p55 = por %p53, %p54
    %p57 = scmp.ne.s32.totalorder %s40, %s56
    %p58 = scmp.eq.s32.totalorder %s18, 0
    %p59 = por %p57, %p58
    %s60 = ssub.s32 %s19, %s31
    %p61 = scmp.eq.s32.totalorder %s60, 0
    %s63 = sadd.s32 %s62, 1
    %s64 = scalar_select %p61, %s62, %s63
    %p67 = pneg %p61
    %p68 = scmp.eq.s32.totalorder %s12, 3
    %p69 = por %p67, %p68
    %p70 = scmp.ne.s32.totalorder %s62, %s65
    %p71 = scmp.eq.s32.totalorder %s12, 0
    %p72 = por %p70, %p71
    %p73 = scmp.ne.s32.totalorder %s62, %s65
    %p74 = scmp.eq.s32.totalorder %s17, 3
    %p75 = por %p73, %p74
    %p76 = scmp.ne.s32.totalorder %s65, %s66
    %p77 = scmp.eq.s32.totalorder %s17, 0
    %p78 = por %p76, %p77
    %p79 = scmp.ne.s32.totalorder %s65, %s66
    %p80 = scmp.eq.s32.totalorder %s18, 3
    %p81 = por %p79, %p80
    %p83 = scmp.ne.s32.totalorder %s66, %s82
    %p84 = scmp.eq.s32.totalorder %s18, 0
    %p85 = por %p83, %p84
    %s86 = ssub.s32 %s20, %s27
    %s87 = ssub.s32 %s19, %s31
    %s88 = sor.u32 %s86, %s87
    %p89 = scmp.eq.s32.totalorder %s88, 0
    %s91 = sadd.s32 %s90, 1
    %s92 = scalar_select %p89, %s90, %s91
    %p95 = pneg %p89
    %p96 = scmp.eq.s32.totalorder %s12, 3
    %p97 = por %p95, %p96
    %p98 = scmp.ne.s32.totalorder %s90, %s93
    %p99 = scmp.eq.s32.totalorder %s12, 0
    %p100 = por %p98, %p99
    %p101 = scmp.ne.s32.totalorder %s90, %s93
    %p102 = scmp.eq.s32.totalorder %s17, 3
    %p103 = por %p101, %p102
    %p104 = scmp.ne.s32.totalorder %s93, %s94
    %p105 = scmp.eq.s32.totalorder %s17, 0
    %p106 = por %p104, %p105
    %p107 = scmp.ne.s32.totalorder %s93, %s94
    %p108 = scmp.eq.s32.totalorder %s18, 3
    %p109 = por %p107, %p108
    %p111 = scmp.ne.s32.totalorder %s94, %s110
    %p112 = scmp.eq.s32.totalorder %s18, 0
    %p113 = por %p111, %p112
    %s114 = ssub.s32 %s19, %s31
    %p115 = scmp.eq.s32.totalorder %s114, 0
    %s117 = sadd.s32 %s116, 1
    %s118 = scalar_select %p115, %s116, %s117
    %p121 = pneg %p115
    %p122 = scmp.eq.s32.totalorder %s12, 3
    %p123 = por %p121, %p122
    %p124 = scmp.ne.s32.totalorder %s116, %s119
    %p125 = scmp.eq.s32.totalorder %s12, 0
    %p126 = por %p124, %p125
    %p127 = scmp.ne.s32.totalorder %s116, %s119
    %p128 = scmp.eq.s32.totalorder %s17, 3
    %p129 = por %p127, %p128
    %p130 = scmp.ne.s32.totalorder %s119, %s120
    %p131 = scmp.eq.s32.totalorder %s17, 0
    %p132 = por %p130, %p131
    %p133 = scmp.ne.s32.totalorder %s119, %s120
    %p134 = scmp.eq.s32.totalorder %s18, 3
    %p135 = por %p133, %p134
    %p137 = scmp.ne.s32.totalorder %s120, %s136
    %p138 = scmp.eq.s32.totalorder %s18, 0
    %p139 = por %p137, %p138
    %s140 = ssub.s32 %s20, %s27
    %s141 = ssub.s32 %s19, %s31
    %s142 = sor.u32 %s140, %s141
    %p143 = scmp.eq.s32.totalorder %s142, 0
    %s145 = sadd.s32 %s144, 1
    %s146 = scalar_select %p143, %s144, %s145
    %p149 = pneg %p143
    %p150 = scmp.eq.s32.totalorder %s12, 3
    %p151 = por %p149, %p150
    %p152 = scmp.ne.s32.totalorder %s144, %s147
    %p153 = scmp.eq.s32.totalorder %s12, 0
    %p154 = por %p152, %p153
    %p155 = scmp.ne.s32.totalorder %s144, %s147
    %p156 = scmp.eq.s32.totalorder %s17, 3
    %p157 = por %p155, %p156
    %p158 = scmp.ne.s32.totalorder %s147, %s148
    %p159 = scmp.eq.s32.totalorder %s17, 0
    %p160 = por %p158, %p159
    %p161 = scmp.ne.s32.totalorder %s147, %s148
    %p162 = scmp.eq.s32.totalorder %s18, 3
    %p163 = por %p161, %p162
    %p165 = scmp.ne.s32.totalorder %s148, %s164
    %p166 = scmp.eq.s32.totalorder %s18, 0
    %p167 = por %p165, %p166
    %s168 = ssub.s32 %s20, %s27
    %s169 = ssub.s32 %s19, %s31
    %s170 = sor.u32 %s168, %s169
    %p171 = scmp.eq.s32.totalorder %s170, 0
    %s173 = sadd.s32 %s172, 1
    %s174 = scalar_select %p171, %s172, %s173
    %p177 = pneg %p171
    %p178 = scmp.eq.s32.totalorder %s12, 3
    %p179 = por %p177, %p178
    %p180 = scmp.ne.s32.totalorder %s172, %s175
    %p181 = scmp.eq.s32.totalorder %s12, 0
    %p182 = por %p180, %p181
    %p183 = scmp.ne.s32.totalorder %s172, %s175
    %p184 = scmp.eq.s32.totalorder %s17, 3
    %p185 = por %p183, %p184
    %p186 = scmp.ne.s32.totalorder %s175, %s176
    %p187 = scmp.eq.s32.totalorder %s17, 0
    %p188 = por %p186, %p187
    %p189 = scmp.ne.s32.totalorder %s175, %s176
    %p190 = scmp.eq.s32.totalorder %s18, 3
    %p191 = por %p189, %p190
    %p193 = scmp.ne.s32.totalorder %s176, %s192
    %p194 = scmp.eq.s32.totalorder %s18, 0
    %p195 = por %p193, %p194
    %p196 = scmp.le.s32.totalorder 1, %s12
    %p197 = scmp.lt.s32.totalorder %s12, 5
    %p198 = pnand %p196, %p197
    %p199 = pneg %p198
    // Predicated region
    $region9: #{lovasz_loss.1} parent=5 // pred_check
      _
    $region10: #{lovasz_loss.1} parent=5 // pred_check_branch
      %201 = sbr.rel (%p198) target = $region12
    $region11: #{lovasz_loss.1} parent=5 // pred_region
      %s202 = ssub.s32 %s12, 1
      // Predicated region
      $region13: #{lovasz_loss.1} parent=11 // pred_check
        %p203 = pneg %p78
      $region14: #{lovasz_loss.1} parent=11 // pred_check_branch
        %205 = sbr.rel (%p203) target = $region16
      $region15: #{lovasz_loss.1} parent=11 // pred_region
        %p206 = scmp.lt.s32.totalorder %s21, 0
        %s207 = scalar_select %p206, %s21, 0
        %s208 = smul.addr %s207, 2
        %s209 = smul.addr %s208, 2
        %s210 = scalar_lea.vmem %s1, %s209
      $region16: #{lovasz_loss.1} parent=11 // pred_fallthru
        _
      // Predicated region
      $region17: #{lovasz_loss.1} parent=11 // pred_check
        %p211 = pneg %p132
      $region18: #{lovasz_loss.1} parent=11 // pred_check_branch
        %213 = sbr.rel (%p211) target = $region20
      $region19: #{lovasz_loss.1} parent=11 // pred_region
        %p214 = scmp.lt.s32.totalorder %s21, 0
        %s215 = scalar_select %p214, %s21, 0
        %s216 = smul.addr %s215, 32
        %s217 = smul.addr %s216, 8
        %s218 = scalar_lea.vmem %s3, %s217
      $region20: #{lovasz_loss.1} parent=11 // pred_fallthru
        _
    $region12: #{lovasz_loss.1} parent=5 // pred_fallthru
      _
    %p219 = scmp.lt.s32.totalorder %s12, 4
    // Predicated region
    $region21: #{lovasz_loss.1} parent=5 // pred_check
      %p220 = pneg %p219
    $region22: #{lovasz_loss.1} parent=5 // pred_check_branch
      %222 = sbr.rel (%p220) target = $region24
    $region23: #{lovasz_loss.1} parent=5 // pred_region
      // Predicated region
      $region25: #{lovasz_loss.1} parent=23 // pred_check
        %p223 = pneg %p46
      $region26: #{lovasz_loss.1} parent=23 // pred_check_branch
        %225 = sbr.rel (%p223) target = $region28
      $region27: #{lovasz_loss.1} parent=23 // pred_region
        %p226 = scmp.lt.s32.totalorder %s20, 3
        %s227 = scalar_select %p226, %s20, 3
        %p228 = scmp.lt.s32.totalorder %s19, 0
        %s229 = scalar_select %p228, %s19, 0
        %s230 = smul.addr %s229, 2
        %s231 = smul.addr %s227, 2
        %s232 = sadd.s32 %s230, %s231
        %s233 = smul.addr %s232, 2
        %s234 = scalar_lea.vmem %s0, %s233
      $region28: #{lovasz_loss.1} parent=23 // pred_fallthru
        _
      // Predicated region
      $region29: #{lovasz_loss.1} parent=23 // pred_check
        %p235 = pneg %p100
      $region30: #{lovasz_loss.1} parent=23 // pred_check_branch
        %237 = sbr.rel (%p235) target = $region32
      $region31: #{lovasz_loss.1} parent=23 // pred_region
        %p238 = scmp.lt.s32.totalorder %s20, 3
        %s239 = scalar_select %p238, %s20, 3
        %p240 = scmp.lt.s32.totalorder %s19, 0
        %s241 = scalar_select %p240, %s19, 0
        %s242 = smul.addr %s241, 32
        %s243 = smul.addr %s239, 32
        %s244 = sadd.s32 %s242, %s243
        %s245 = smul.addr %s244, 8
        %s246 = scalar_lea.vmem %s2, %s245
      $region32: #{lovasz_loss.1} parent=23 // pred_fallthru
        _
    $region24: #{lovasz_loss.1} parent=5 // pred_fallthru
      _
    %p247 = scmp.le.s32.totalorder 1, %s12
    %p248 = scmp.lt.s32.totalorder %s12, 5
    %p249 = pnand %p247, %p248
    %p250 = pneg %p249
    // Predicated region
    $region33: #{lovasz_loss.1} parent=5 // pred_check
      _
    $region34: #{lovasz_loss.1} parent=5 // pred_check_branch
      %252 = sbr.rel (%p249) target = $region36
    $region35: #{lovasz_loss.1} parent=5 // pred_region
      %s253 = ssub.s32 %s12, 1
      %p254 = scmp.lt.s32.totalorder %s22, 3
      %s255 = scalar_select %p254, %s22, 3
      %p256 = scmp.lt.s32.totalorder %s21, 0
      %s257 = scalar_select %p256, %s21, 0
      %s258 = smul.addr %s257, 2
      %s259 = smul.addr %s255, 2
      %s260 = sadd.s32 %s258, %s259
      %s261 = smul.addr %s260, 2
      %s262 = scalar_lea.vmem %s0, %s261
      %p263 = pneg %p52
      %p264 = pneg %p49
      %p265 = scmp.lt.s32.totalorder %s21, 0
      %s266 = scalar_select %p265, %s21, 0
      %s267 = smul.addr %s266, 2
      %s268 = smul.addr %s267, 2
      %s269 = scalar_lea.vmem %s1, %s268
      %p270 = pneg %p78
      %p271 = pneg %p75
      %p272 = scmp.lt.s32.totalorder %s22, 3
      %s273 = scalar_select %p272, %s22, 3
      %p274 = scmp.lt.s32.totalorder %s21, 0
      %s275 = scalar_select %p274, %s21, 0
      %s276 = smul.addr %s275, 32
      %s277 = smul.addr %s273, 32
      %s278 = sadd.s32 %s276, %s277
      %s279 = smul.addr %s278, 8
      %s280 = scalar_lea.vmem %s2, %s279
      %p281 = pneg %p106
      %p282 = pneg %p103
      %p283 = scmp.lt.s32.totalorder %s21, 0
      %s284 = scalar_select %p283, %s21, 0
      %s285 = smul.addr %s284, 32
      %s286 = smul.addr %s285, 8
      %s287 = scalar_lea.vmem %s3, %s286
      %p288 = pneg %p132
      %p289 = pneg %p129
      %p290 = pneg %p160
      %p291 = pneg %p157
      %p292 = scmp.lt.s32.totalorder %s22, 3
      %s293 = scalar_select %p292, %s22, 3
      %p294 = scmp.lt.s32.totalorder %s21, 0
      %s295 = scalar_select %p294, %s21, 0
      %s296 = sadd.s32 %s295, %s293
      %s297 = scalar_lea.vmem %s4, %s296
      %p298 = pneg %p188
      %p299 = pneg %p185
      %p300 = scmp.lt.s32.totalorder %s22, 3
      %s301 = scalar_select %p300, %s22, 3
      %p302 = scmp.lt.s32.totalorder %s21, 0
      %s303 = scalar_select %p302, %s21, 0
      %s304 = sadd.s32 %s303, %s301
      %s305 = scalar_lea.vmem %s5, %s304
      %p306 = scmp.lt.s32.totalorder %s22, 3
      %s307 = scalar_select %p306, %s22, 3
      %p308 = scmp.lt.s32.totalorder %s21, 0
      %s309 = scalar_select %p308, %s21, 0
      %s310 = smul.addr %s309, 2
      %s311 = smul.addr %s307, 2
      %s312 = sadd.s32 %s310, %s311
      %s313 = smul.addr %s312, 2
      %s314 = scalar_lea.vmem %s0, %s313
      %p315 = scmp.lt.s32.totalorder %s21, 0
      %s316 = scalar_select %p315, %s21, 0
      %s317 = smul.addr %s316, 2
      %s318 = smul.addr %s317, 2
      %s319 = scalar_lea.vmem %s1, %s318
      %p320 = scmp.lt.s32.totalorder %s22, 3
      %s321 = scalar_select %p320, %s22, 3
      %p322 = scmp.lt.s32.totalorder %s21, 0
      %s323 = scalar_select %p322, %s21, 0
      %s324 = smul.addr %s323, 32
      %s325 = smul.addr %s321, 32
      %s326 = sadd.s32 %s324, %s325
      %s327 = smul.addr %s326, 8
      %s328 = scalar_lea.vmem %s2, %s327
      %p329 = scmp.lt.s32.totalorder %s21, 0
      %s330 = scalar_select %p329, %s21, 0
      %s331 = smul.addr %s330, 32
      %s332 = smul.addr %s331, 8
      %s333 = scalar_lea.vmem %s3, %s332
      %p334 = scmp.lt.s32.totalorder %s22, 3
      %s335 = scalar_select %p334, %s22, 3
      %p336 = scmp.lt.s32.totalorder %s21, 0
      %s337 = scalar_select %p336, %s21, 0
      %s338 = sadd.s32 %s337, %s335
      %s339 = scalar_lea.vmem %s4, %s338
      %p340 = scmp.lt.s32.totalorder %s22, 3
      %s341 = scalar_select %p340, %s22, 3
      %p342 = scmp.lt.s32.totalorder %s21, 0
      %s343 = scalar_select %p342, %s21, 0
      %s344 = sadd.s32 %s343, %s341
      %s345 = scalar_lea.vmem %s5, %s344
      %v346 = vld [vmem:[%s314] sm:$0xf]
      %v347 = vld [vmem:[%s319] sm:$0xf]
      %v348 = vld [vmem:[%s328] sm:$0xff]
      %v349 = vld [vmem:[%s328 + $0x8] sm:$0xff]
      %v350 = vld [vmem:[%s328 + $0x10] sm:$0xff]
      %v351 = vld [vmem:[%s328 + $0x18] sm:$0xff]
      %v352 = vld [vmem:[%s328 + $0x20] sm:$0xff]
      %v353 = vld [vmem:[%s328 + $0x28] sm:$0xff]
      %v354 = vld [vmem:[%s328 + $0x30] sm:$0xff]
      %v355 = vld [vmem:[%s328 + $0x38] sm:$0xff]
      %v356 = vld [vmem:[%s328 + $0x40] sm:$0xff]
      %v357 = vld [vmem:[%s328 + $0x48] sm:$0xff]
      %v358 = vld [vmem:[%s328 + $0x50] sm:$0xff]
      %v359 = vld [vmem:[%s328 + $0x58] sm:$0xff]
      %v360 = vld [vmem:[%s328 + $0x60] sm:$0xff]
      %v361 = vld [vmem:[%s328 + $0x68] sm:$0xff]
      %v362 = vld [vmem:[%s328 + $0x70] sm:$0xff]
      %v363 = vld [vmem:[%s328 + $0x78] sm:$0xff]
      %v364 = vld [vmem:[%s328 + $0x80] sm:$0xff]
      %v365 = vld [vmem:[%s328 + $0x88] sm:$0xff]
      %v366 = vld [vmem:[%s328 + $0x90] sm:$0xff]
      %v367 = vld [vmem:[%s328 + $0x98] sm:$0xff]
      %v368 = vld [vmem:[%s328 + $0xa0] sm:$0xff]
      %v369 = vld [vmem:[%s328 + $0xa8] sm:$0xff]
      %v370 = vld [vmem:[%s328 + $0xb0] sm:$0xff]
      %v371 = vld [vmem:[%s328 + $0xb8] sm:$0xff]
      %v372 = vld [vmem:[%s328 + $0xc0] sm:$0xff]
      %v373 = vld [vmem:[%s328 + $0xc8] sm:$0xff]
      %v374 = vld [vmem:[%s328 + $0xd0] sm:$0xff]
      %v375 = vld [vmem:[%s328 + $0xd8] sm:$0xff]
      %v376 = vld [vmem:[%s328 + $0xe0] sm:$0xff]
      %v377 = vld [vmem:[%s328 + $0xe8] sm:$0xff]
      %v378 = vld [vmem:[%s328 + $0xf0] sm:$0xff]
      %v379 = vld [vmem:[%s328 + $0xf8] sm:$0xff]
      %v380 = vld [vmem:[%s333] sm:$0xff]
      %v381 = vld [vmem:[%s333 + $0x8] sm:$0xff]
      %v382 = vld [vmem:[%s333 + $0x10] sm:$0xff]
      %v383 = vld [vmem:[%s333 + $0x18] sm:$0xff]
      %v384 = vld [vmem:[%s333 + $0x20] sm:$0xff]
      %v385 = vld [vmem:[%s333 + $0x28] sm:$0xff]
      %v386 = vld [vmem:[%s333 + $0x30] sm:$0xff]
      %v387 = vld [vmem:[%s333 + $0x38] sm:$0xff]
      %v388 = vld [vmem:[%s333 + $0x40] sm:$0xff]
      %v389 = vld [vmem:[%s333 + $0x48] sm:$0xff]
      %v390 = vld [vmem:[%s333 + $0x50] sm:$0xff]
      %v391 = vld [vmem:[%s333 + $0x58] sm:$0xff]
      %v392 = vld [vmem:[%s333 + $0x60] sm:$0xff]
      %v393 = vld [vmem:[%s333 + $0x68] sm:$0xff]
      %v394 = vld [vmem:[%s333 + $0x70] sm:$0xff]
      %v395 = vld [vmem:[%s333 + $0x78] sm:$0xff]
      %v396 = vld [vmem:[%s333 + $0x80] sm:$0xff]
      %v397 = vld [vmem:[%s333 + $0x88] sm:$0xff]
      %v398 = vld [vmem:[%s333 + $0x90] sm:$0xff]
      %v399 = vld [vmem:[%s333 + $0x98] sm:$0xff]
      %v400 = vld [vmem:[%s333 + $0xa0] sm:$0xff]
      %v401 = vld [vmem:[%s333 + $0xa8] sm:$0xff]
      %v402 = vld [vmem:[%s333 + $0xb0] sm:$0xff]
      %v403 = vld [vmem:[%s333 + $0xb8] sm:$0xff]
      %v404 = vld [vmem:[%s333 + $0xc0] sm:$0xff]
      %v405 = vld [vmem:[%s333 + $0xc8] sm:$0xff]
      %v406 = vld [vmem:[%s333 + $0xd0] sm:$0xff]
      %v407 = vld [vmem:[%s333 + $0xd8] sm:$0xff]
      %v408 = vld [vmem:[%s333 + $0xe0] sm:$0xff]
      %v409 = vld [vmem:[%s333 + $0xe8] sm:$0xff]
      %v410 = vld [vmem:[%s333 + $0xf0] sm:$0xff]
      %v411 = vld [vmem:[%s333 + $0xf8] sm:$0xff]
      %vm412 = vcmp.ne.s32.totalorder %v347, 0
      %vm413 = vcmp.ne.s32.totalorder %v380, 0
      %vm414 = vcmp.ne.s32.totalorder %v381, 0
      %vm415 = vcmp.ne.s32.totalorder %v382, 0
      %vm416 = vcmp.ne.s32.totalorder %v383, 0
      %vm417 = vcmp.ne.s32.totalorder %v384, 0
      %vm418 = vcmp.ne.s32.totalorder %v385, 0
      %vm419 = vcmp.ne.s32.totalorder %v386, 0
      %vm420 = vcmp.ne.s32.totalorder %v387, 0
      %vm421 = vcmp.ne.s32.totalorder %v388, 0
      %vm422 = vcmp.ne.s32.totalorder %v389, 0
      %vm423 = vcmp.ne.s32.totalorder %v390, 0
      %vm424 = vcmp.ne.s32.totalorder %v391, 0
      %vm425 = vcmp.ne.s32.totalorder %v392, 0
      %vm426 = vcmp.ne.s32.totalorder %v393, 0
      %vm427 = vcmp.ne.s32.totalorder %v394, 0
      %vm428 = vcmp.ne.s32.totalorder %v395, 0
      %vm429 = vcmp.ne.s32.totalorder %v396, 0
      %vm430 = vcmp.ne.s32.totalorder %v397, 0
      %vm431 = vcmp.ne.s32.totalorder %v398, 0
      %vm432 = vcmp.ne.s32.totalorder %v399, 0
      %vm433 = vcmp.ne.s32.totalorder %v400, 0
      %vm434 = vcmp.ne.s32.totalorder %v401, 0
      %vm435 = vcmp.ne.s32.totalorder %v402, 0
      %vm436 = vcmp.ne.s32.totalorder %v403, 0
      %vm437 = vcmp.ne.s32.totalorder %v404, 0
      %vm438 = vcmp.ne.s32.totalorder %v405, 0
      %vm439 = vcmp.ne.s32.totalorder %v406, 0
      %vm440 = vcmp.ne.s32.totalorder %v407, 0
      %vm441 = vcmp.ne.s32.totalorder %v408, 0
      %vm442 = vcmp.ne.s32.totalorder %v409, 0
      %vm443 = vcmp.ne.s32.totalorder %v410, 0
      %vm444 = vcmp.ne.s32.totalorder %v411, 0
      %v445 = vsel %vm412, 1, 0
      %v446 = vcvt.s32.f32 %v445
      %v447 = vstv %s22
      %vm448 = vcmp.eq.s32.totalorder %v347, %v447
      %vm449 = vmand %vm448, %vm412
      %v450 = vsel %vm449, 1, 0
      %v451 = vcvt.s32.f32 %v450
      %vm452 = vcmp.eq.s32.totalorder %v380, %v447
      %vm453 = vcmp.eq.s32.totalorder %v381, %v447
      %vm454 = vcmp.eq.s32.totalorder %v382, %v447
      %vm455 = vcmp.eq.s32.totalorder %v383, %v447
      %vm456 = vcmp.eq.s32.totalorder %v384, %v447
      %vm457 = vcmp.eq.s32.totalorder %v385, %v447
      %vm458 = vcmp.eq.s32.totalorder %v386, %v447
      %vm459 = vcmp.eq.s32.totalorder %v387, %v447
      %vm460 = vcmp.eq.s32.totalorder %v388, %v447
      %vm461 = vcmp.eq.s32.totalorder %v389, %v447
      %vm462 = vcmp.eq.s32.totalorder %v390, %v447
      %vm463 = vcmp.eq.s32.totalorder %v391, %v447
      %vm464 = vcmp.eq.s32.totalorder %v392, %v447
      %vm465 = vcmp.eq.s32.totalorder %v393, %v447
      %vm466 = vcmp.eq.s32.totalorder %v394, %v447
      %vm467 = vcmp.eq.s32.totalorder %v395, %v447
      %vm468 = vcmp.eq.s32.totalorder %v396, %v447
      %vm469 = vcmp.eq.s32.totalorder %v397, %v447
      %vm470 = vcmp.eq.s32.totalorder %v398, %v447
      %vm471 = vcmp.eq.s32.totalorder %v399, %v447
      %vm472 = vcmp.eq.s32.totalorder %v400, %v447
      %vm473 = vcmp.eq.s32.totalorder %v401, %v447
      %vm474 = vcmp.eq.s32.totalorder %v402, %v447
      %vm475 = vcmp.eq.s32.totalorder %v403, %v447
      %vm476 = vcmp.eq.s32.totalorder %v404, %v447
      %vm477 = vcmp.eq.s32.totalorder %v405, %v447
      %vm478 = vcmp.eq.s32.totalorder %v406, %v447
      %vm479 = vcmp.eq.s32.totalorder %v407, %v447
      %vm480 = vcmp.eq.s32.totalorder %v408, %v447
      %vm481 = vcmp.eq.s32.totalorder %v409, %v447
      %vm482 = vcmp.eq.s32.totalorder %v410, %v447
      %vm483 = vcmp.eq.s32.totalorder %v411, %v447
      %vm484 = vmand %vm452, %vm413
      %vm485 = vmand %vm453, %vm414
      %vm486 = vmand %vm454, %vm415
      %vm487 = vmand %vm455, %vm416
      %vm488 = vmand %vm456, %vm417
      %vm489 = vmand %vm457, %vm418
      %vm490 = vmand %vm458, %vm419
      %vm491 = vmand %vm459, %vm420
      %vm492 = vmand %vm460, %vm421
      %vm493 = vmand %vm461, %vm422
      %vm494 = vmand %vm462, %vm423
      %vm495 = vmand %vm463, %vm424
      %vm496 = vmand %vm464, %vm425
      %vm497 = vmand %vm465, %vm426
      %vm498 = vmand %vm466, %vm427
      %vm499 = vmand %vm467, %vm428
      %vm500 = vmand %vm468, %vm429
      %vm501 = vmand %vm469, %vm430
      %vm502 = vmand %vm470, %vm431
      %vm503 = vmand %vm471, %vm432
      %vm504 = vmand %vm472, %vm433
      %vm505 = vmand %vm473, %vm434
      %vm506 = vmand %vm474, %vm435
      %vm507 = vmand %vm475, %vm436
      %vm508 = vmand %vm476, %vm437
      %vm509 = vmand %vm477, %vm438
      %vm510 = vmand %vm478, %vm439
      %vm511 = vmand %vm479, %vm440
      %vm512 = vmand %vm480, %vm441
      %vm513 = vmand %vm481, %vm442
      %vm514 = vmand %vm482, %vm443
      %vm515 = vmand %vm483, %vm444
      %v516 = vsel %vm484, 1, 0
      %v517 = vsel %vm485, 1, 0
      %v518 = vsel %vm486, 1, 0
      %v519 = vsel %vm487, 1, 0
      %v520 = vsel %vm488, 1, 0
      %v521 = vsel %vm489, 1, 0
      %v522 = vsel %vm490, 1, 0
      %v523 = vsel %vm491, 1, 0
      %v524 = vsel %vm492, 1, 0
      %v525 = vsel %vm493, 1, 0
      %v526 = vsel %vm494, 1, 0
      %v527 = vsel %vm495, 1, 0
      %v528 = vsel %vm496, 1, 0
      %v529 = vsel %vm497, 1, 0
      %v530 = vsel %vm498, 1, 0
      %v531 = vsel %vm499, 1, 0
      %v532 = vsel %vm500, 1, 0
      %v533 = vsel %vm501, 1, 0
      %v534 = vsel %vm502, 1, 0
      %v535 = vsel %vm503, 1, 0
      %v536 = vsel %vm504, 1, 0
      %v537 = vsel %vm505, 1, 0
      %v538 = vsel %vm506, 1, 0
      %v539 = vsel %vm507, 1, 0
      %v540 = vsel %vm508, 1, 0
      %v541 = vsel %vm509, 1, 0
      %v542 = vsel %vm510, 1, 0
      %v543 = vsel %vm511, 1, 0
      %v544 = vsel %vm512, 1, 0
      %v545 = vsel %vm513, 1, 0
      %v546 = vsel %vm514, 1, 0
      %v547 = vsel %vm515, 1, 0
      %v548 = vcvt.s32.f32 %v516
      %v549 = vcvt.s32.f32 %v517
      %v550 = vcvt.s32.f32 %v518
      %v551 = vcvt.s32.f32 %v519
      %v552 = vcvt.s32.f32 %v520
      %v553 = vcvt.s32.f32 %v521
      %v554 = vcvt.s32.f32 %v522
      %v555 = vcvt.s32.f32 %v523
      %v556 = vcvt.s32.f32 %v524
      %v557 = vcvt.s32.f32 %v525
      %v558 = vcvt.s32.f32 %v526
      %v559 = vcvt.s32.f32 %v527
      %v560 = vcvt.s32.f32 %v528
      %v561 = vcvt.s32.f32 %v529
      %v562 = vcvt.s32.f32 %v530
      %v563 = vcvt.s32.f32 %v531
      %v564 = vcvt.s32.f32 %v532
      %v565 = vcvt.s32.f32 %v533
      %v566 = vcvt.s32.f32 %v534
      %v567 = vcvt.s32.f32 %v535
      %v568 = vcvt.s32.f32 %v536
      %v569 = vcvt.s32.f32 %v537
      %v570 = vcvt.s32.f32 %v538
      %v571 = vcvt.s32.f32 %v539
      %v572 = vcvt.s32.f32 %v540
      %v573 = vcvt.s32.f32 %v541
      %v574 = vcvt.s32.f32 %v542
      %v575 = vcvt.s32.f32 %v543
      %v576 = vcvt.s32.f32 %v544
      %v577 = vcvt.s32.f32 %v545
      %v578 = vcvt.s32.f32 %v546
      %v579 = vcvt.s32.f32 %v547
      %v580 = vsub.f32 %v451, %v346
      %v581 = vand.u32 2147483647, %v580
      %v582 = vsel %vm412, %v581, -1.0
      %v583 = vsub.f32 %v548, %v348
      %v584 = vsub.f32 %v549, %v349
      %v585 = vsub.f32 %v550, %v350
      %v586 = vsub.f32 %v551, %v351
      %v587 = vsub.f32 %v552, %v352
      %v588 = vsub.f32 %v553, %v353
      %v589 = vsub.f32 %v554, %v354
      %v590 = vsub.f32 %v555, %v355
      %v591 = vsub.f32 %v556, %v356
      %v592 = vsub.f32 %v557, %v357
      %v593 = vsub.f32 %v558, %v358
      %v594 = vsub.f32 %v559, %v359
      %v595 = vsub.f32 %v560, %v360
      %v596 = vsub.f32 %v561, %v361
      %v597 = vsub.f32 %v562, %v362
      %v598 = vsub.f32 %v563, %v363
      %v599 = vsub.f32 %v564, %v364
      %v600 = vsub.f32 %v565, %v365
      %v601 = vsub.f32 %v566, %v366
      %v602 = vsub.f32 %v567, %v367
      %v603 = vsub.f32 %v568, %v368
      %v604 = vsub.f32 %v569, %v369
      %v605 = vsub.f32 %v570, %v370
      %v606 = vsub.f32 %v571, %v371
      %v607 = vsub.f32 %v572, %v372
      %v608 = vsub.f32 %v573, %v373
      %v609 = vsub.f32 %v574, %v374
      %v610 = vsub.f32 %v575, %v375
      %v611 = vsub.f32 %v576, %v376
      %v612 = vsub.f32 %v577, %v377
      %v613 = vsub.f32 %v578, %v378
      %v614 = vsub.f32 %v579, %v379
      %v615 = vand.u32 2147483647, %v583
      %v616 = vand.u32 2147483647, %v584
      %v617 = vand.u32 2147483647, %v585
      %v618 = vand.u32 2147483647, %v586
      %v619 = vand.u32 2147483647, %v587
      %v620 = vand.u32 2147483647, %v588
      %v621 = vand.u32 2147483647, %v589
      %v622 = vand.u32 2147483647, %v590
      %v623 = vand.u32 2147483647, %v591
      %v624 = vand.u32 2147483647, %v592
      %v625 = vand.u32 2147483647, %v593
      %v626 = vand.u32 2147483647, %v594
      %v627 = vand.u32 2147483647, %v595
      %v628 = vand.u32 2147483647, %v596
      %v629 = vand.u32 2147483647, %v597
      %v630 = vand.u32 2147483647, %v598
      %v631 = vand.u32 2147483647, %v599
      %v632 = vand.u32 2147483647, %v600
      %v633 = vand.u32 2147483647, %v601
      %v634 = vand.u32 2147483647, %v602
      %v635 = vand.u32 2147483647, %v603
      %v636 = vand.u32 2147483647, %v604
      %v637 = vand.u32 2147483647, %v605
      %v638 = vand.u32 2147483647, %v606
      %v639 = vand.u32 2147483647, %v607
      %v640 = vand.u32 2147483647, %v608
      %v641 = vand.u32 2147483647, %v609
      %v642 = vand.u32 2147483647, %v610
      %v643 = vand.u32 2147483647, %v611
      %v644 = vand.u32 2147483647, %v612
      %v645 = vand.u32 2147483647, %v613
      %v646 = vand.u32 2147483647, %v614
      %v647 = vsel %vm413, %v615, -1.0
      %v648 = vsel %vm414, %v616, -1.0
      %v649 = vsel %vm415, %v617, -1.0
      %v650 = vsel %vm416, %v618, -1.0
      %v651 = vsel %vm417, %v619, -1.0
      %v652 = vsel %vm418, %v620, -1.0
      %v653 = vsel %vm419, %v621, -1.0
      %v654 = vsel %vm420, %v622, -1.0
      %v655 = vsel %vm421, %v623, -1.0
      %v656 = vsel %vm422, %v624, -1.0
      %v657 = vsel %vm423, %v625, -1.0
      %v658 = vsel %vm424, %v626, -1.0
      %v659 = vsel %vm425, %v627, -1.0
      %v660 = vsel %vm426, %v628, -1.0
      %v661 = vsel %vm427, %v629, -1.0
      %v662 = vsel %vm428, %v630, -1.0
      %v663 = vsel %vm429, %v631, -1.0
      %v664 = vsel %vm430, %v632, -1.0
      %v665 = vsel %vm431, %v633, -1.0
      %v666 = vsel %vm432, %v634, -1.0
      %v667 = vsel %vm433, %v635, -1.0
      %v668 = vsel %vm434, %v636, -1.0
      %v669 = vsel %vm435, %v637, -1.0
      %v670 = vsel %vm436, %v638, -1.0
      %v671 = vsel %vm437, %v639, -1.0
      %v672 = vsel %vm438, %v640, -1.0
      %v673 = vsel %vm439, %v641, -1.0
      %v674 = vsel %vm440, %v642, -1.0
      %v675 = vsel %vm441, %v643, -1.0
      %v676 = vsel %vm442, %v644, -1.0
      %v677 = vsel %vm443, %v645, -1.0
      %v678 = vsel %vm444, %v646, -1.0
      %v679 = vlaneseq
      %v680 = vshrl.u32 %v679, 7
      %v681 = vadd.s32 %v680, 8
      %v682 = vadd.s32 %v680, 16
      %v683 = vadd.s32 %v680, 24
      %v684 = vadd.s32 %v680, 32
      %v685 = vadd.s32 %v680, 40
      %v686 = vadd.s32 %v680, 48
      %v687 = vadd.s32 %v680, 56
      %v688 = vadd.s32 %v680, 64
      %v689 = vadd.s32 %v680, 72
      %v690 = vadd.s32 %v680, 80
      %v691 = vadd.s32 %v680, 88
      %v692 = vadd.s32 %v680, 96
      %v693 = vadd.s32 %v680, 104
      %v694 = vadd.s32 %v680, 112
      %v695 = vadd.s32 %v680, 120
      %v696 = vadd.s32 %v680, 128
      %v697 = vadd.s32 %v680, 136
      %v698 = vadd.s32 %v680, 144
      %v699 = vadd.s32 %v680, 152
      %v700 = vadd.s32 %v680, 160
      %v701 = vadd.s32 %v680, 168
      %v702 = vadd.s32 %v680, 176
      %v703 = vadd.s32 %v680, 184
      %v704 = vadd.s32 %v680, 192
      %v705 = vadd.s32 %v680, 200
      %v706 = vadd.s32 %v680, 208
      %v707 = vadd.s32 %v680, 216
      %v708 = vadd.s32 %v680, 224
      %v709 = vadd.s32 %v680, 232
      %v710 = vadd.s32 %v680, 240
      %v711 = vadd.s32 %v680, 248
      %v712 = vlaneseq
      %v713 = vand.u32 %v712, 127
      %v714 = vadd.s32 %v713, 128
      %vm715 = vcmp.le.s32.totalorder %v680, %v713
      %vm716 = vcmp.le.s32.totalorder %v680, %v714
      %vm717 = vcmp.le.s32.totalorder %v681, %v713
      %vm718 = vcmp.le.s32.totalorder %v681, %v714
      %vm719 = vcmp.le.s32.totalorder %v682, %v713
      %vm720 = vcmp.le.s32.totalorder %v682, %v714
      %vm721 = vcmp.le.s32.totalorder %v683, %v713
      %vm722 = vcmp.le.s32.totalorder %v683, %v714
      %vm723 = vcmp.le.s32.totalorder %v684, %v713
      %vm724 = vcmp.le.s32.totalorder %v684, %v714
      %vm725 = vcmp.le.s32.totalorder %v685, %v713
      %vm726 = vcmp.le.s32.totalorder %v685, %v714
      %vm727 = vcmp.le.s32.totalorder %v686, %v713
      %vm728 = vcmp.le.s32.totalorder %v686, %v714
      %vm729 = vcmp.le.s32.totalorder %v687, %v713
      %vm730 = vcmp.le.s32.totalorder %v687, %v714
      %vm731 = vcmp.le.s32.totalorder %v688, %v713
      %vm732 = vcmp.le.s32.totalorder %v688, %v714
      %vm733 = vcmp.le.s32.totalorder %v689, %v713
      %vm734 = vcmp.le.s32.totalorder %v689, %v714
      %vm735 = vcmp.le.s32.totalorder %v690, %v713
      %vm736 = vcmp.le.s32.totalorder %v690, %v714
      %vm737 = vcmp.le.s32.totalorder %v691, %v713
      %vm738 = vcmp.le.s32.totalorder %v691, %v714
      %vm739 = vcmp.le.s32.totalorder %v692, %v713
      %vm740 = vcmp.le.s32.totalorder %v692, %v714
      %vm741 = vcmp.le.s32.totalorder %v693, %v713
      %vm742 = vcmp.le.s32.totalorder %v693, %v714
      %vm743 = vcmp.le.s32.totalorder %v694, %v713
      %vm744 = vcmp.le.s32.totalorder %v694, %v714
      %vm745 = vcmp.le.s32.totalorder %v695, %v713
      %vm746 = vcmp.le.s32.totalorder %v695, %v714
      %vm747 = vcmp.le.s32.totalorder %v696, %v713
      %vm748 = vcmp.le.s32.totalorder %v696, %v714
      %vm749 = vcmp.le.s32.totalorder %v697, %v713
      %vm750 = vcmp.le.s32.totalorder %v697, %v714
      %vm751 = vcmp.le.s32.totalorder %v698, %v713
      %vm752 = vcmp.le.s32.totalorder %v698, %v714
      %vm753 = vcmp.le.s32.totalorder %v699, %v713
      %vm754 = vcmp.le.s32.totalorder %v699, %v714
      %vm755 = vcmp.le.s32.totalorder %v700, %v713
      %vm756 = vcmp.le.s32.totalorder %v700, %v714
      %vm757 = vcmp.le.s32.totalorder %v701, %v713
      %vm758 = vcmp.le.s32.totalorder %v701, %v714
      %vm759 = vcmp.le.s32.totalorder %v702, %v713
      %vm760 = vcmp.le.s32.totalorder %v702, %v714
      %vm761 = vcmp.le.s32.totalorder %v703, %v713
      %vm762 = vcmp.le.s32.totalorder %v703, %v714
      %vm763 = vcmp.le.s32.totalorder %v704, %v713
      %vm764 = vcmp.le.s32.totalorder %v704, %v714
      %vm765 = vcmp.le.s32.totalorder %v705, %v713
      %vm766 = vcmp.le.s32.totalorder %v705, %v714
      %vm767 = vcmp.le.s32.totalorder %v706, %v713
      %vm768 = vcmp.le.s32.totalorder %v706, %v714
      %vm769 = vcmp.le.s32.totalorder %v707, %v713
      %vm770 = vcmp.le.s32.totalorder %v707, %v714
      %vm771 = vcmp.le.s32.totalorder %v708, %v713
      %vm772 = vcmp.le.s32.totalorder %v708, %v714
      %vm773 = vcmp.le.s32.totalorder %v709, %v713
      %vm774 = vcmp.le.s32.totalorder %v709, %v714
      %vm775 = vcmp.le.s32.totalorder %v710, %v713
      %vm776 = vcmp.le.s32.totalorder %v710, %v714
      %vm777 = vcmp.le.s32.totalorder %v711, %v713
      %vm778 = vcmp.le.s32.totalorder %v711, %v714
      %vm779 = vcmp.eq.s32.totalorder %v680, 0
      %v780 = vsel %vm779, 1.0, 0.0
      %782 = vset.pattern.permute.xlu0 0
      %783 = vperm.xlu0 %782, %v647
      %v784 = vpop.permute.xlu0 %783
      %787 = vset.pattern.permute.xlu0 0
      %788 = vperm.xlu0 %787, %v648
      %v789 = vpop.permute.xlu0 %788
      %792 = vset.pattern.permute.xlu0 0
      %793 = vperm.xlu0 %792, %v649
      %v794 = vpop.permute.xlu0 %793
      %797 = vset.pattern.permute.xlu0 0
      %798 = vperm.xlu0 %797, %v650
      %v799 = vpop.permute.xlu0 %798
      %802 = vset.pattern.permute.xlu0 0
      %803 = vperm.xlu0 %802, %v651
      %v804 = vpop.permute.xlu0 %803
      %807 = vset.pattern.permute.xlu0 0
      %808 = vperm.xlu0 %807, %v652
      %v809 = vpop.permute.xlu0 %808
      %812 = vset.pattern.permute.xlu0 0
      %813 = vperm.xlu0 %812, %v653
      %v814 = vpop.permute.xlu0 %813
      %817 = vset.pattern.permute.xlu0 0
      %818 = vperm.xlu0 %817, %v654
      %v819 = vpop.permute.xlu0 %818
      %822 = vset.pattern.permute.xlu0 0
      %823 = vperm.xlu0 %822, %v655
      %v824 = vpop.permute.xlu0 %823
      %827 = vset.pattern.permute.xlu0 0
      %828 = vperm.xlu0 %827, %v656
      %v829 = vpop.permute.xlu0 %828
      %832 = vset.pattern.permute.xlu0 0
      %833 = vperm.xlu0 %832, %v657
      %v834 = vpop.permute.xlu0 %833
      %837 = vset.pattern.permute.xlu0 0
      %838 = vperm.xlu0 %837, %v658
      %v839 = vpop.permute.xlu0 %838
      %842 = vset.pattern.permute.xlu0 0
      %843 = vperm.xlu0 %842, %v659
      %v844 = vpop.permute.xlu0 %843
      %847 = vset.pattern.permute.xlu0 0
      %848 = vperm.xlu0 %847, %v660
      %v849 = vpop.permute.xlu0 %848
      %852 = vset.pattern.permute.xlu0 0
      %853 = vperm.xlu0 %852, %v661
      %v854 = vpop.permute.xlu0 %853
      %857 = vset.pattern.permute.xlu0 0
      %858 = vperm.xlu0 %857, %v662
      %v859 = vpop.permute.xlu0 %858
      %862 = vset.pattern.permute.xlu0 0
      %863 = vperm.xlu0 %862, %v663
      %v864 = vpop.permute.xlu0 %863
      %867 = vset.pattern.permute.xlu0 0
      %868 = vperm.xlu0 %867, %v664
      %v869 = vpop.permute.xlu0 %868
      %872 = vset.pattern.permute.xlu0 0
      %873 = vperm.xlu0 %872, %v665
      %v874 = vpop.permute.xlu0 %873
      %877 = vset.pattern.permute.xlu0 0
      %878 = vperm.xlu0 %877, %v666
      %v879 = vpop.permute.xlu0 %878
      %882 = vset.pattern.permute.xlu0 0
      %883 = vperm.xlu0 %882, %v667
      %v884 = vpop.permute.xlu0 %883
      %887 = vset.pattern.permute.xlu0 0
      %888 = vperm.xlu0 %887, %v668
      %v889 = vpop.permute.xlu0 %888
      %892 = vset.pattern.permute.xlu0 0
      %893 = vperm.xlu0 %892, %v669
      %v894 = vpop.permute.xlu0 %893
      %897 = vset.pattern.permute.xlu0 0
      %898 = vperm.xlu0 %897, %v670
      %v899 = vpop.permute.xlu0 %898
      %902 = vset.pattern.permute.xlu0 0
      %903 = vperm.xlu0 %902, %v671
      %v904 = vpop.permute.xlu0 %903
      %907 = vset.pattern.permute.xlu0 0
      %908 = vperm.xlu0 %907, %v672
      %v909 = vpop.permute.xlu0 %908
      %912 = vset.pattern.permute.xlu0 0
      %913 = vperm.xlu0 %912, %v673
      %v914 = vpop.permute.xlu0 %913
      %917 = vset.pattern.permute.xlu0 0
      %918 = vperm.xlu0 %917, %v674
      %v919 = vpop.permute.xlu0 %918
      %922 = vset.pattern.permute.xlu0 0
      %923 = vperm.xlu0 %922, %v675
      %v924 = vpop.permute.xlu0 %923
      %927 = vset.pattern.permute.xlu0 0
      %928 = vperm.xlu0 %927, %v676
      %v929 = vpop.permute.xlu0 %928
      %932 = vset.pattern.permute.xlu0 0
      %933 = vperm.xlu0 %932, %v677
      %v934 = vpop.permute.xlu0 %933
      %937 = vset.pattern.permute.xlu0 0
      %938 = vperm.xlu0 %937, %v678
      %v939 = vpop.permute.xlu0 %938
      %v942 = vlaneseq
      %v943 = vshrl.u32 %v942, 7
      %v944 = vsub.s32 0, %v943
      %v945 = vrot.slane %v582, %v944
      %v946 = vlaneseq
      %v947 = vshrl.u32 %v946, 7
      %v948 = vsub.s32 2, %v947
      %v949 = vrot.slane %v582, %v948
      %v952 = vlaneseq
      %v953 = vshrl.u32 %v952, 7
      %v954 = vsub.s32 0, %v953
      %v955 = vrot.slane %v945, %v954
      %v956 = vlaneseq
      %v957 = vshrl.u32 %v956, 7
      %v958 = vsub.s32 0, %v957
      %v959 = vrot.slane %v949, %v958
      %vm960 = vcmp.gt.f32.partialorder %v784, %v955
      %vm961 = vcmp.gt.f32.partialorder %v784, %v959
      %vm962 = vcmp.gt.f32.partialorder %v789, %v955
      %vm963 = vcmp.gt.f32.partialorder %v789, %v959
      %vm964 = vcmp.gt.f32.partialorder %v794, %v955
      %vm965 = vcmp.gt.f32.partialorder %v794, %v959
      %vm966 = vcmp.gt.f32.partialorder %v799, %v955
      %vm967 = vcmp.gt.f32.partialorder %v799, %v959
      %vm968 = vcmp.gt.f32.partialorder %v804, %v955
      %vm969 = vcmp.gt.f32.partialorder %v804, %v959
      %vm970 = vcmp.gt.f32.partialorder %v809, %v955
      %vm971 = vcmp.gt.f32.partialorder %v809, %v959
      %vm972 = vcmp.gt.f32.partialorder %v814, %v955
      %vm973 = vcmp.gt.f32.partialorder %v814, %v959
      %vm974 = vcmp.gt.f32.partialorder %v819, %v955
      %vm975 = vcmp.gt.f32.partialorder %v819, %v959
      %vm976 = vcmp.gt.f32.partialorder %v824, %v955
      %vm977 = vcmp.gt.f32.partialorder %v824, %v959
      %vm978 = vcmp.gt.f32.partialorder %v829, %v955
      %vm979 = vcmp.gt.f32.partialorder %v829, %v959
      %vm980 = vcmp.gt.f32.partialorder %v834, %v955
      %vm981 = vcmp.gt.f32.partialorder %v834, %v959
      %vm982 = vcmp.gt.f32.partialorder %v839, %v955
      %vm983 = vcmp.gt.f32.partialorder %v839, %v959
      %vm984 = vcmp.gt.f32.partialorder %v844, %v955
      %vm985 = vcmp.gt.f32.partialorder %v844, %v959
      %vm986 = vcmp.gt.f32.partialorder %v849, %v955
      %vm987 = vcmp.gt.f32.partialorder %v849, %v959
      %vm988 = vcmp.gt.f32.partialorder %v854, %v955
      %vm989 = vcmp.gt.f32.partialorder %v854, %v959
      %vm990 = vcmp.gt.f32.partialorder %v859, %v955
      %vm991 = vcmp.gt.f32.partialorder %v859, %v959
      %vm992 = vcmp.gt.f32.partialorder %v864, %v955
      %vm993 = vcmp.gt.f32.partialorder %v864, %v959
      %vm994 = vcmp.gt.f32.partialorder %v869, %v955
      %vm995 = vcmp.gt.f32.partialorder %v869, %v959
      %vm996 = vcmp.gt.f32.partialorder %v874, %v955
      %vm997 = vcmp.gt.f32.partialorder %v874, %v959
      %vm998 = vcmp.gt.f32.partialorder %v879, %v955
      %vm999 = vcmp.gt.f32.partialorder %v879, %v959
      %vm1000 = vcmp.gt.f32.partialorder %v884, %v955
      %vm1001 = vcmp.gt.f32.partialorder %v884, %v959
      %vm1002 = vcmp.gt.f32.partialorder %v889, %v955
      %vm1003 = vcmp.gt.f32.partialorder %v889, %v959
      %vm1004 = vcmp.gt.f32.partialorder %v894, %v955
      %vm1005 = vcmp.gt.f32.partialorder %v894, %v959
      %vm1006 = vcmp.gt.f32.partialorder %v899, %v955
      %vm1007 = vcmp.gt.f32.partialorder %v899, %v959
      %vm1008 = vcmp.gt.f32.partialorder %v904, %v955
      %vm1009 = vcmp.gt.f32.partialorder %v904, %v959
      %vm1010 = vcmp.gt.f32.partialorder %v909, %v955
      %vm1011 = vcmp.gt.f32.partialorder %v909, %v959
      %vm1012 = vcmp.gt.f32.partialorder %v914, %v955
      %vm1013 = vcmp.gt.f32.partialorder %v914, %v959
      %vm1014 = vcmp.gt.f32.partialorder %v919, %v955
      %vm1015 = vcmp.gt.f32.partialorder %v919, %v959
      %vm1016 = vcmp.gt.f32.partialorder %v924, %v955
      %vm1017 = vcmp.gt.f32.partialorder %v924, %v959
      %vm1018 = vcmp.gt.f32.partialorder %v929, %v955
      %vm1019 = vcmp.gt.f32.partialorder %v929, %v959
      %vm1020 = vcmp.gt.f32.partialorder %v934, %v955
      %vm1021 = vcmp.gt.f32.partialorder %v934, %v959
      %vm1022 = vcmp.gt.f32.partialorder %v939, %v955
      %vm1023 = vcmp.gt.f32.partialorder %v939, %v959
      %vm1024 = vcmp.eq.f32.partialorder %v784, %v955
      %vm1025 = vcmp.eq.f32.partialorder %v784, %v959
      %vm1026 = vcmp.eq.f32.partialorder %v789, %v955
      %vm1027 = vcmp.eq.f32.partialorder %v789, %v959
      %vm1028 = vcmp.eq.f32.partialorder %v794, %v955
      %vm1029 = vcmp.eq.f32.partialorder %v794, %v959
      %vm1030 = vcmp.eq.f32.partialorder %v799, %v955
      %vm1031 = vcmp.eq.f32.partialorder %v799, %v959
      %vm1032 = vcmp.eq.f32.partialorder %v804, %v955
      %vm1033 = vcmp.eq.f32.partialorder %v804, %v959
      %vm1034 = vcmp.eq.f32.partialorder %v809, %v955
      %vm1035 = vcmp.eq.f32.partialorder %v809, %v959
      %vm1036 = vcmp.eq.f32.partialorder %v814, %v955
      %vm1037 = vcmp.eq.f32.partialorder %v814, %v959
      %vm1038 = vcmp.eq.f32.partialorder %v819, %v955
      %vm1039 = vcmp.eq.f32.partialorder %v819, %v959
      %vm1040 = vcmp.eq.f32.partialorder %v824, %v955
      %vm1041 = vcmp.eq.f32.partialorder %v824, %v959
      %vm1042 = vcmp.eq.f32.partialorder %v829, %v955
      %vm1043 = vcmp.eq.f32.partialorder %v829, %v959
      %vm1044 = vcmp.eq.f32.partialorder %v834, %v955
      %vm1045 = vcmp.eq.f32.partialorder %v834, %v959
      %vm1046 = vcmp.eq.f32.partialorder %v839, %v955
      %vm1047 = vcmp.eq.f32.partialorder %v839, %v959
      %vm1048 = vcmp.eq.f32.partialorder %v844, %v955
      %vm1049 = vcmp.eq.f32.partialorder %v844, %v959
      %vm1050 = vcmp.eq.f32.partialorder %v849, %v955
      %vm1051 = vcmp.eq.f32.partialorder %v849, %v959
      %vm1052 = vcmp.eq.f32.partialorder %v854, %v955
      %vm1053 = vcmp.eq.f32.partialorder %v854, %v959
      %vm1054 = vcmp.eq.f32.partialorder %v859, %v955
      %vm1055 = vcmp.eq.f32.partialorder %v859, %v959
      %vm1056 = vcmp.eq.f32.partialorder %v864, %v955
      %vm1057 = vcmp.eq.f32.partialorder %v864, %v959
      %vm1058 = vcmp.eq.f32.partialorder %v869, %v955
      %vm1059 = vcmp.eq.f32.partialorder %v869, %v959
      %vm1060 = vcmp.eq.f32.partialorder %v874, %v955
      %vm1061 = vcmp.eq.f32.partialorder %v874, %v959
      %vm1062 = vcmp.eq.f32.partialorder %v879, %v955
      %vm1063 = vcmp.eq.f32.partialorder %v879, %v959
      %vm1064 = vcmp.eq.f32.partialorder %v884, %v955
      %vm1065 = vcmp.eq.f32.partialorder %v884, %v959
      %vm1066 = vcmp.eq.f32.partialorder %v889, %v955
      %vm1067 = vcmp.eq.f32.partialorder %v889, %v959
      %vm1068 = vcmp.eq.f32.partialorder %v894, %v955
      %vm1069 = vcmp.eq.f32.partialorder %v894, %v959
      %vm1070 = vcmp.eq.f32.partialorder %v899, %v955
      %vm1071 = vcmp.eq.f32.partialorder %v899, %v959
      %vm1072 = vcmp.eq.f32.partialorder %v904, %v955
      %vm1073 = vcmp.eq.f32.partialorder %v904, %v959
      %vm1074 = vcmp.eq.f32.partialorder %v909, %v955
      %vm1075 = vcmp.eq.f32.partialorder %v909, %v959
      %vm1076 = vcmp.eq.f32.partialorder %v914, %v955
      %vm1077 = vcmp.eq.f32.partialorder %v914, %v959
      %vm1078 = vcmp.eq.f32.partialorder %v919, %v955
      %vm1079 = vcmp.eq.f32.partialorder %v919, %v959
      %vm1080 = vcmp.eq.f32.partialorder %v924, %v955
      %vm1081 = vcmp.eq.f32.partialorder %v924, %v959
      %vm1082 = vcmp.eq.f32.partialorder %v929, %v955
      %vm1083 = vcmp.eq.f32.partialorder %v929, %v959
      %vm1084 = vcmp.eq.f32.partialorder %v934, %v955
      %vm1085 = vcmp.eq.f32.partialorder %v934, %v959
      %vm1086 = vcmp.eq.f32.partialorder %v939, %v955
      %vm1087 = vcmp.eq.f32.partialorder %v939, %v959
      %vm1088 = vmand %vm1024, %vm715
      %vm1089 = vmand %vm1025, %vm716
      %vm1090 = vmand %vm1026, %vm717
      %vm1091 = vmand %vm1027, %vm718
      %vm1092 = vmand %vm1028, %vm719
      %vm1093 = vmand %vm1029, %vm720
      %vm1094 = vmand %vm1030, %vm721
      %vm1095 = vmand %vm1031, %vm722
      %vm1096 = vmand %vm1032, %vm723
      %vm1097 = vmand %vm1033, %vm724
      %vm1098 = vmand %vm1034, %vm725
      %vm1099 = vmand %vm1035, %vm726
      %vm1100 = vmand %vm1036, %vm727
      %vm1101 = vmand %vm1037, %vm728
      %vm1102 = vmand %vm1038, %vm729
      %vm1103 = vmand %vm1039, %vm730
      %vm1104 = vmand %vm1040, %vm731
      %vm1105 = vmand %vm1041, %vm732
      %vm1106 = vmand %vm1042, %vm733
      %vm1107 = vmand %vm1043, %vm734
      %vm1108 = vmand %vm1044, %vm735
      %vm1109 = vmand %vm1045, %vm736
      %vm1110 = vmand %vm1046, %vm737
      %vm1111 = vmand %vm1047, %vm738
      %vm1112 = vmand %vm1048, %vm739
      %vm1113 = vmand %vm1049, %vm740
      %vm1114 = vmand %vm1050, %vm741
      %vm1115 = vmand %vm1051, %vm742
      %vm1116 = vmand %vm1052, %vm743
      %vm1117 = vmand %vm1053, %vm744
      %vm1118 = vmand %vm1054, %vm745
      %vm1119 = vmand %vm1055, %vm746
      %vm1120 = vmand %vm1056, %vm747
      %vm1121 = vmand %vm1057, %vm748
      %vm1122 = vmand %vm1058, %vm749
      %vm1123 = vmand %vm1059, %vm750
      %vm1124 = vmand %vm1060, %vm751
      %vm1125 = vmand %vm1061, %vm752
      %vm1126 = vmand %vm1062, %vm753
      %vm1127 = vmand %vm1063, %vm754
      %vm1128 = vmand %vm1064, %vm755
      %vm1129 = vmand %vm1065, %vm756
      %vm1130 = vmand %vm1066, %vm757
      %vm1131 = vmand %vm1067, %vm758
      %vm1132 = vmand %vm1068, %vm759
      %vm1133 = vmand %vm1069, %vm760
      %vm1134 = vmand %vm1070, %vm761
      %vm1135 = vmand %vm1071, %vm762
      %vm1136 = vmand %vm1072, %vm763
      %vm1137 = vmand %vm1073, %vm764
      %vm1138 = vmand %vm1074, %vm765
      %vm1139 = vmand %vm1075, %vm766
      %vm1140 = vmand %vm1076, %vm767
      %vm1141 = vmand %vm1077, %vm768
      %vm1142 = vmand %vm1078, %vm769
      %vm1143 = vmand %vm1079, %vm770
      %vm1144 = vmand %vm1080, %vm771
      %vm1145 = vmand %vm1081, %vm772
      %vm1146 = vmand %vm1082, %vm773
      %vm1147 = vmand %vm1083, %vm774
      %vm1148 = vmand %vm1084, %vm775
      %vm1149 = vmand %vm1085, %vm776
      %vm1150 = vmand %vm1086, %vm777
      %vm1151 = vmand %vm1087, %vm778
      %vm1152 = vmor %vm960, %vm1088
      %vm1153 = vmor %vm961, %vm1089
      %vm1154 = vmor %vm962, %vm1090
      %vm1155 = vmor %vm963, %vm1091
      %vm1156 = vmor %vm964, %vm1092
      %vm1157 = vmor %vm965, %vm1093
      %vm1158 = vmor %vm966, %vm1094
      %vm1159 = vmor %vm967, %vm1095
      %vm1160 = vmor %vm968, %vm1096
      %vm1161 = vmor %vm969, %vm1097
      %vm1162 = vmor %vm970, %vm1098
      %vm1163 = vmor %vm971, %vm1099
      %vm1164 = vmor %vm972, %vm1100
      %vm1165 = vmor %vm973, %vm1101
      %vm1166 = vmor %vm974, %vm1102
      %vm1167 = vmor %vm975, %vm1103
      %vm1168 = vmor %vm976, %vm1104
      %vm1169 = vmor %vm977, %vm1105
      %vm1170 = vmor %vm978, %vm1106
      %vm1171 = vmor %vm979, %vm1107
      %vm1172 = vmor %vm980, %vm1108
      %vm1173 = vmor %vm981, %vm1109
      %vm1174 = vmor %vm982, %vm1110
      %vm1175 = vmor %vm983, %vm1111
      %vm1176 = vmor %vm984, %vm1112
      %vm1177 = vmor %vm985, %vm1113
      %vm1178 = vmor %vm986, %vm1114
      %vm1179 = vmor %vm987, %vm1115
      %vm1180 = vmor %vm988, %vm1116
      %vm1181 = vmor %vm989, %vm1117
      %vm1182 = vmor %vm990, %vm1118
      %vm1183 = vmor %vm991, %vm1119
      %vm1184 = vmor %vm992, %vm1120
      %vm1185 = vmor %vm993, %vm1121
      %vm1186 = vmor %vm994, %vm1122
      %vm1187 = vmor %vm995, %vm1123
      %vm1188 = vmor %vm996, %vm1124
      %vm1189 = vmor %vm997, %vm1125
      %vm1190 = vmor %vm998, %vm1126
      %vm1191 = vmor %vm999, %vm1127
      %vm1192 = vmor %vm1000, %vm1128
      %vm1193 = vmor %vm1001, %vm1129
      %vm1194 = vmor %vm1002, %vm1130
      %vm1195 = vmor %vm1003, %vm1131
      %vm1196 = vmor %vm1004, %vm1132
      %vm1197 = vmor %vm1005, %vm1133
      %vm1198 = vmor %vm1006, %vm1134
      %vm1199 = vmor %vm1007, %vm1135
      %vm1200 = vmor %vm1008, %vm1136
      %vm1201 = vmor %vm1009, %vm1137
      %vm1202 = vmor %vm1010, %vm1138
      %vm1203 = vmor %vm1011, %vm1139
      %vm1204 = vmor %vm1012, %vm1140
      %vm1205 = vmor %vm1013, %vm1141
      %vm1206 = vmor %vm1014, %vm1142
      %vm1207 = vmor %vm1015, %vm1143
      %vm1208 = vmor %vm1016, %vm1144
      %vm1209 = vmor %vm1017, %vm1145
      %vm1210 = vmor %vm1018, %vm1146
      %vm1211 = vmor %vm1019, %vm1147
      %vm1212 = vmor %vm1020, %vm1148
      %vm1213 = vmor %vm1021, %vm1149
      %vm1214 = vmor %vm1022, %vm1150
      %vm1215 = vmor %vm1023, %vm1151
      %v1216 = vsel %vm1152, 1.0, 0.0
      %v1217 = vsel %vm1153, 1.0, 0.0
      %v1218 = vsel %vm1154, 1.0, 0.0
      %v1219 = vsel %vm1155, 1.0, 0.0
      %v1220 = vsel %vm1156, 1.0, 0.0
      %v1221 = vsel %vm1157, 1.0, 0.0
      %v1222 = vsel %vm1158, 1.0, 0.0
      %v1223 = vsel %vm1159, 1.0, 0.0
      %v1224 = vsel %vm1160, 1.0, 0.0
      %v1225 = vsel %vm1161, 1.0, 0.0
      %v1226 = vsel %vm1162, 1.0, 0.0
      %v1227 = vsel %vm1163, 1.0, 0.0
      %v1228 = vsel %vm1164, 1.0, 0.0
      %v1229 = vsel %vm1165, 1.0, 0.0
      %v1230 = vsel %vm1166, 1.0, 0.0
      %v1231 = vsel %vm1167, 1.0, 0.0
      %v1232 = vsel %vm1168, 1.0, 0.0
      %v1233 = vsel %vm1169, 1.0, 0.0
      %v1234 = vsel %vm1170, 1.0, 0.0
      %v1235 = vsel %vm1171, 1.0, 0.0
      %v1236 = vsel %vm1172, 1.0, 0.0
      %v1237 = vsel %vm1173, 1.0, 0.0
      %v1238 = vsel %vm1174, 1.0, 0.0
      %v1239 = vsel %vm1175, 1.0, 0.0
      %v1240 = vsel %vm1176, 1.0, 0.0
      %v1241 = vsel %vm1177, 1.0, 0.0
      %v1242 = vsel %vm1178, 1.0, 0.0
      %v1243 = vsel %vm1179, 1.0, 0.0
      %v1244 = vsel %vm1180, 1.0, 0.0
      %v1245 = vsel %vm1181, 1.0, 0.0
      %v1246 = vsel %vm1182, 1.0, 0.0
      %v1247 = vsel %vm1183, 1.0, 0.0
      %v1248 = vsel %vm1184, 1.0, 0.0
      %v1249 = vsel %vm1185, 1.0, 0.0
      %v1250 = vsel %vm1186, 1.0, 0.0
      %v1251 = vsel %vm1187, 1.0, 0.0
      %v1252 = vsel %vm1188, 1.0, 0.0
      %v1253 = vsel %vm1189, 1.0, 0.0
      %v1254 = vsel %vm1190, 1.0, 0.0
      %v1255 = vsel %vm1191, 1.0, 0.0
      %v1256 = vsel %vm1192, 1.0, 0.0
      %v1257 = vsel %vm1193, 1.0, 0.0
      %v1258 = vsel %vm1194, 1.0, 0.0
      %v1259 = vsel %vm1195, 1.0, 0.0
      %v1260 = vsel %vm1196, 1.0, 0.0
      %v1261 = vsel %vm1197, 1.0, 0.0
      %v1262 = vsel %vm1198, 1.0, 0.0
      %v1263 = vsel %vm1199, 1.0, 0.0
      %v1264 = vsel %vm1200, 1.0, 0.0
      %v1265 = vsel %vm1201, 1.0, 0.0
      %v1266 = vsel %vm1202, 1.0, 0.0
      %v1267 = vsel %vm1203, 1.0, 0.0
      %v1268 = vsel %vm1204, 1.0, 0.0
      %v1269 = vsel %vm1205, 1.0, 0.0
      %v1270 = vsel %vm1206, 1.0, 0.0
      %v1271 = vsel %vm1207, 1.0, 0.0
      %v1272 = vsel %vm1208, 1.0, 0.0
      %v1273 = vsel %vm1209, 1.0, 0.0
      %v1274 = vsel %vm1210, 1.0, 0.0
      %v1275 = vsel %vm1211, 1.0, 0.0
      %v1276 = vsel %vm1212, 1.0, 0.0
      %v1277 = vsel %vm1213, 1.0, 0.0
      %v1278 = vsel %vm1214, 1.0, 0.0
      %v1279 = vsel %vm1215, 1.0, 0.0
      %v1280 = vpack.c.bf16 %v1218, %v1216
      %v1281 = vpack.c.bf16 %v1219, %v1217
      %v1282 = vpack.c.bf16 %v1222, %v1220
      %v1283 = vpack.c.bf16 %v1223, %v1221
      %v1284 = vpack.c.bf16 %v1226, %v1224
      %v1285 = vpack.c.bf16 %v1227, %v1225
      %v1286 = vpack.c.bf16 %v1230, %v1228
      %v1287 = vpack.c.bf16 %v1231, %v1229
      %v1288 = vpack.c.bf16 %v1234, %v1232
      %v1289 = vpack.c.bf16 %v1235, %v1233
      %v1290 = vpack.c.bf16 %v1238, %v1236
      %v1291 = vpack.c.bf16 %v1239, %v1237
      %v1292 = vpack.c.bf16 %v1242, %v1240
      %v1293 = vpack.c.bf16 %v1243, %v1241
      %v1294 = vpack.c.bf16 %v1246, %v1244
      %v1295 = vpack.c.bf16 %v1247, %v1245
      %v1296 = vpack.c.bf16 %v1250, %v1248
      %v1297 = vpack.c.bf16 %v1251, %v1249
      %v1298 = vpack.c.bf16 %v1254, %v1252
      %v1299 = vpack.c.bf16 %v1255, %v1253
      %v1300 = vpack.c.bf16 %v1258, %v1256
      %v1301 = vpack.c.bf16 %v1259, %v1257
      %v1302 = vpack.c.bf16 %v1262, %v1260
      %v1303 = vpack.c.bf16 %v1263, %v1261
      %v1304 = vpack.c.bf16 %v1266, %v1264
      %v1305 = vpack.c.bf16 %v1267, %v1265
      %v1306 = vpack.c.bf16 %v1270, %v1268
      %v1307 = vpack.c.bf16 %v1271, %v1269
      %v1308 = vpack.c.bf16 %v1274, %v1272
      %v1309 = vpack.c.bf16 %v1275, %v1273
      %v1310 = vpack.c.bf16 %v1278, %v1276
      %v1311 = vpack.c.bf16 %v1279, %v1277
      %vm1312 = vcmp.eq.s32.totalorder %v680, 1
      %v1314 = vlaneseq
      %v1315 = vshrl.u32 %v1314, 7
      %v1316 = vsub.s32 0, %v1315
      %v1317 = vrot.slane %v451, %v1316
      %v1318 = vlaneseq
      %v1319 = vshrl.u32 %v1318, 7
      %v1320 = vsub.s32 2, %v1319
      %v1321 = vrot.slane %v451, %v1320
      %v1324 = vlaneseq
      %v1325 = vshrl.u32 %v1324, 7
      %v1326 = vsub.s32 0, %v1325
      %v1327 = vrot.slane %v1317, %v1326
      %v1328 = vlaneseq
      %v1329 = vshrl.u32 %v1328, 7
      %v1330 = vsub.s32 0, %v1329
      %v1331 = vrot.slane %v1321, %v1330
      %v1332 = vsel %vm1312, %v1327, %v780
      %v1333 = vsel %vm1312, %v1331, %v780
      %v1334 = vpack.c.bf16 %v1332, %v1332
      %v1335 = vpack.c.bf16 %v1333, %v1333
      %1336 = vmatprep.subr.bf16.mxu0 %v1295
      %1337 = vmatpush1.bf16.msra.mxu0 %v1294
      %1338 = vmatprep.subr.bf16.mxu0 %v1293
      %1339 = vmatpush1.bf16.msra.mxu0 %v1292
      %1340 = vmatprep.subr.bf16.mxu0 %v1291
      %1341 = vmatpush1.bf16.msra.mxu0 %v1290
      %1342 = vmatprep.subr.bf16.mxu0 %v1289
      %1343 = vmatpush1.bf16.msra.mxu0 %v1288
      %1344 = vmatprep.subr.bf16.mxu0 %v1287
      %1345 = vmatpush1.bf16.msra.mxu0 %v1286
      %1346 = vmatprep.subr.bf16.mxu0 %v1285
      %1347 = vmatpush1.bf16.msra.mxu0 %v1284
      %1348 = vmatprep.subr.bf16.mxu0 %v1283
      %1349 = vmatpush1.bf16.msra.mxu0 %v1282
      %1350 = vmatprep.subr.bf16.mxu0 %v1281
      %1351 = vmatpush1.bf16.msra.mxu0 %v1280
      %1352 = vmatprep.subr.bf16.mxu0 %v1311
      %1353 = vmatpush2.bf16.msra.mxu0 %v1310
      %1354 = vmatprep.subr.bf16.mxu0 %v1309
      %1355 = vmatpush2.bf16.msra.mxu0 %v1308
      %1356 = vmatprep.subr.bf16.mxu0 %v1307
      %1357 = vmatpush2.bf16.msra.mxu0 %v1306
      %1358 = vmatprep.subr.bf16.mxu0 %v1305
      %1359 = vmatpush2.bf16.msra.mxu0 %v1304
      %1360 = vmatprep.subr.bf16.mxu0 %v1303
      %1361 = vmatpush2.bf16.msra.mxu0 %v1302
      %1362 = vmatprep.subr.bf16.mxu0 %v1301
      %1363 = vmatpush2.bf16.msra.mxu0 %v1300
      %1364 = vmatprep.subr.bf16.mxu0 %v1299
      %1365 = vmatpush2.bf16.msra.mxu0 %v1298
      %1366 = vmatprep.subr.bf16.mxu0 %v1297
      %1367 = vmatpush2.bf16.msra.mxu0 %v1296
      %1368 = vmatprep.mubr.bf16.mxu0 %v1335
      %1369 = vmatmul.mubr.bf16.gmra.mxu0 %v1334
      %v1370 = vpop.f32.mrf.mxu0
      %v1371 = vadd.f32 0.0, %v1370
      %v1372 = vpop.f32.mrf.mxu0
      %v1373 = vadd.f32 0.0, %v1372
      %v1374 = vpop.f32.mrf.mxu0
      %v1375 = vpop.f32.mrf.mxu0
      %1376 = vdwg.mxu0
      %vm1377 = vcmask 1040384
      %v1378 = vsel %vm1377, %v1317, 0.0
      %v1379 = vsel %vm1377, %v1321, 0.0
      %v1380 = vadd.f32 %v1378, %v1379
      %1381 = vadd.xlane.f32.xlu0 %v1380
      %v1382 = vpop.xlane.xlu0 %1381
      %v1383 = vrot.slane %v1382, 4
      %v1384 = vadd.f32 %v1382, %v1383
      %v1385 = vrot.slane %v1384, 2
      %v1386 = vadd.f32 %v1384, %v1385
      %v1387 = vrot.slane %v1386, 1
      %v1388 = vadd.f32 %v1386, %v1387
      %s1389 = vtos %v1388
      %v1390 = vstv %s1389
      %v1391 = vsub.f32 %v1390, %v1371
      %v1392 = vsub.f32 %v1390, %v1373
      %v1395 = vrot.slane %v1371, 1
      %v1396 = vrot.slane %v1373, 1
      %v1399 = vsub.f32 %v1371, %v1395
      %v1400 = vsub.f32 %v1373, %v1396
      %v1401 = vadd.f32 %v1390, %v1399
      %v1402 = vadd.f32 %v1390, %v1400
      %v1405 = vrot.slane %v1401, 7
      %v1406 = vrot.slane %v1402, 7
      %v1409 = vrcp.pop %v1405
      %v1410 = vmul.f32 %v1391, %v1409
      %v1411 = vrcp.pop %v1406
      %v1412 = vmul.f32 %v1392, %v1411
      %v1413 = vsub.f32 1.0, %v1410
      %v1414 = vsub.f32 1.0, %v1412
      %v1415 = vsub.f32 %v1371, %v1317
      %v1416 = vsub.f32 %v1373, %v1321
      %vm1417 = vcmp.gt.f32.partialorder %v1371, 1.5
      %vm1418 = vcmp.gt.f32.partialorder %v1373, 1.5
      %v1419 = vsub.f32 %v1371, 1.0
      %v1420 = vsub.f32 %v1373, 1.0
      %v1423 = vrot.slane %v1415, 1
      %v1424 = vrot.slane %v1416, 1
      %v1427 = vsub.f32 %v1419, %v1423
      %v1428 = vsub.f32 %v1420, %v1424
      %v1429 = vadd.f32 %v1390, %v1427
      %v1430 = vadd.f32 %v1390, %v1428
      %v1431 = vsel %vm1417, %v1429, 1.0
      %v1432 = vsel %vm1418, %v1430, 1.0
      %v1433 = vsub.f32 %v1390, %v1415
      %v1434 = vsub.f32 %v1390, %v1416
      %v1437 = vrot.slane %v1431, 7
      %v1438 = vrot.slane %v1432, 7
      %v1441 = vrcp.pop %v1437
      %v1442 = vmul.f32 %v1433, %v1441
      %v1443 = vrcp.pop %v1438
      %v1444 = vmul.f32 %v1434, %v1443
      %v1445 = vsub.f32 1.0, %v1442
      %v1446 = vsub.f32 1.0, %v1444
      %v1449 = vrot.slane %v1445, 1
      %v1450 = vrot.slane %v1446, 1
      %v1453 = vsel %vm1417, %v1449, 0.0
      %v1454 = vsel %vm1418, %v1450, 0.0
      %v1457 = vrot.slane %v1453, 7
      %v1458 = vrot.slane %v1454, 7
      %v1461 = vsub.f32 %v1413, %v1457
      %v1462 = vsub.f32 %v1414, %v1458
      %v1463 = vmul.f32 %v446, %v582
      %v1466 = vcombine.low %v1461, %v1462
      %v1468 = vunpack.c.l.s4 1983009808
      %v1469 = vunpack.c.0.s8 %v1468
      %v1470 = vlaneseq
      %v1471 = vshrl.u32 %v1470, 7
      %v1472 = vsub.s32 %v1469, %v1471
      %v1473 = vrot.slane %v1466, %v1472
      %v1474 = vrot.slane %v1473, 7
      %v1475 = vrot.slane %v1474, 2
      %v1477 = vmul.f32 %v1463, %v1475
      %v1479 = vlaneseq
      %v1480 = vshrl.u32 %v1479, 7
      %v1481 = vsub.s32 0, %v1480
      %v1482 = vrot.slane %v1477, %v1481
      %v1483 = vlaneseq
      %v1484 = vshrl.u32 %v1483, 7
      %v1485 = vsub.s32 2, %v1484
      %v1486 = vrot.slane %v1477, %v1485
      %v1489 = vsel %vm1377, %v1482, 0.0
      %v1490 = vsel %vm1377, %v1486, 0.0
      %v1491 = vadd.f32 %v1489, %v1490
      %1492 = vadd.xlane.f32.xlu0 %v1491
      %v1493 = vpop.xlane.xlu0 %1492
      %v1494 = vrot.slane %v1493, 4
      %v1495 = vadd.f32 %v1493, %v1494
      %v1496 = vrot.slane %v1495, 2
      %v1497 = vadd.f32 %v1495, %v1496
      %v1498 = vrot.slane %v1497, 1
      %v1499 = vadd.f32 %v1497, %v1498
      %s1500 = vtos %v1499
      %p1501 = scmp.gt.f32.partialorder %s1389, 0.0
      %s1502 = scalar_select %p1501, 1, 0
      %s1503 = scvt.s32.f32 %s1502
      %vm1504 = vcmp.eq.s32.totalorder %v713, 0
      %s1505 = smul.f32 %s1503, %s1500
      %v1506 = vstv %s1505
      %v1507 = vsel %vm1504, %v1506, 0.0
      %v1508 = vadd.f32 %v1507, 0.0
      %v1509 = vstv %s1503
      %v1510 = vsel %vm1504, %v1509, 0.0
      %v1511 = vadd.f32 %v1510, 0.0
      %1512 = vset.pattern.permute.xlu0 1
      %1513 = vperm.xlu0 %1512, %v647
      %v1514 = vpop.permute.xlu0 %1513
      %1516 = vset.pattern.permute.xlu0 1
      %1517 = vperm.xlu0 %1516, %v648
      %v1518 = vpop.permute.xlu0 %1517
      %1520 = vset.pattern.permute.xlu0 1
      %1521 = vperm.xlu0 %1520, %v649
      %v1522 = vpop.permute.xlu0 %1521
      %1524 = vset.pattern.permute.xlu0 1
      %1525 = vperm.xlu0 %1524, %v650
      %v1526 = vpop.permute.xlu0 %1525
      %1528 = vset.pattern.permute.xlu0 1
      %1529 = vperm.xlu0 %1528, %v651
      %v1530 = vpop.permute.xlu0 %1529
      %1532 = vset.pattern.permute.xlu0 1
      %1533 = vperm.xlu0 %1532, %v652
      %v1534 = vpop.permute.xlu0 %1533
      %1536 = vset.pattern.permute.xlu0 1
      %1537 = vperm.xlu0 %1536, %v653
      %v1538 = vpop.permute.xlu0 %1537
      %1540 = vset.pattern.permute.xlu0 1
      %1541 = vperm.xlu0 %1540, %v654
      %v1542 = vpop.permute.xlu0 %1541
      %1544 = vset.pattern.permute.xlu0 1
      %1545 = vperm.xlu0 %1544, %v655
      %v1546 = vpop.permute.xlu0 %1545
      %1548 = vset.pattern.permute.xlu0 1
      %1549 = vperm.xlu0 %1548, %v656
      %v1550 = vpop.permute.xlu0 %1549
      %1552 = vset.pattern.permute.xlu0 1
      %1553 = vperm.xlu0 %1552, %v657
      %v1554 = vpop.permute.xlu0 %1553
      %1556 = vset.pattern.permute.xlu0 1
      %1557 = vperm.xlu0 %1556, %v658
      %v1558 = vpop.permute.xlu0 %1557
      %1560 = vset.pattern.permute.xlu0 1
      %1561 = vperm.xlu0 %1560, %v659
      %v1562 = vpop.permute.xlu0 %1561
      %1564 = vset.pattern.permute.xlu0 1
      %1565 = vperm.xlu0 %1564, %v660
      %v1566 = vpop.permute.xlu0 %1565
      %1568 = vset.pattern.permute.xlu0 1
      %1569 = vperm.xlu0 %1568, %v661
      %v1570 = vpop.permute.xlu0 %1569
      %1572 = vset.pattern.permute.xlu0 1
      %1573 = vperm.xlu0 %1572, %v662
      %v1574 = vpop.permute.xlu0 %1573
      %1576 = vset.pattern.permute.xlu0 1
      %1577 = vperm.xlu0 %1576, %v663
      %v1578 = vpop.permute.xlu0 %1577
      %1580 = vset.pattern.permute.xlu0 1
      %1581 = vperm.xlu0 %1580, %v664
      %v1582 = vpop.permute.xlu0 %1581
      %1584 = vset.pattern.permute.xlu0 1
      %1585 = vperm.xlu0 %1584, %v665
      %v1586 = vpop.permute.xlu0 %1585
      %1588 = vset.pattern.permute.xlu0 1
      %1589 = vperm.xlu0 %1588, %v666
      %v1590 = vpop.permute.xlu0 %1589
      %1592 = vset.pattern.permute.xlu0 1
      %1593 = vperm.xlu0 %1592, %v667
      %v1594 = vpop.permute.xlu0 %1593
      %1596 = vset.pattern.permute.xlu0 1
      %1597 = vperm.xlu0 %1596, %v668
      %v1598 = vpop.permute.xlu0 %1597
      %1600 = vset.pattern.permute.xlu0 1
      %1601 = vperm.xlu0 %1600, %v669
      %v1602 = vpop.permute.xlu0 %1601
      %1604 = vset.pattern.permute.xlu0 1
      %1605 = vperm.xlu0 %1604, %v670
      %v1606 = vpop.permute.xlu0 %1605
      %1608 = vset.pattern.permute.xlu0 1
      %1609 = vperm.xlu0 %1608, %v671
      %v1610 = vpop.permute.xlu0 %1609
      %1612 = vset.pattern.permute.xlu0 1
      %1613 = vperm.xlu0 %1612, %v672
      %v1614 = vpop.permute.xlu0 %1613
      %1616 = vset.pattern.permute.xlu0 1
      %1617 = vperm.xlu0 %1616, %v673
      %v1618 = vpop.permute.xlu0 %1617
      %1620 = vset.pattern.permute.xlu0 1
      %1621 = vperm.xlu0 %1620, %v674
      %v1622 = vpop.permute.xlu0 %1621
      %1624 = vset.pattern.permute.xlu0 1
      %1625 = vperm.xlu0 %1624, %v675
      %v1626 = vpop.permute.xlu0 %1625
      %1628 = vset.pattern.permute.xlu0 1
      %1629 = vperm.xlu0 %1628, %v676
      %v1630 = vpop.permute.xlu0 %1629
      %1632 = vset.pattern.permute.xlu0 1
      %1633 = vperm.xlu0 %1632, %v677
      %v1634 = vpop.permute.xlu0 %1633
      %1636 = vset.pattern.permute.xlu0 1
      %1637 = vperm.xlu0 %1636, %v678
      %v1638 = vpop.permute.xlu0 %1637
      %v1640 = vlaneseq
      %v1641 = vshrl.u32 %v1640, 7
      %v1642 = vsub.s32 1, %v1641
      %v1643 = vrot.slane %v582, %v1642
      %v1644 = vlaneseq
      %v1645 = vshrl.u32 %v1644, 7
      %v1646 = vsub.s32 3, %v1645
      %v1647 = vrot.slane %v582, %v1646
      %v1650 = vlaneseq
      %v1651 = vshrl.u32 %v1650, 7
      %v1652 = vsub.s32 1, %v1651
      %v1653 = vrot.slane %v1643, %v1652
      %v1654 = vlaneseq
      %v1655 = vshrl.u32 %v1654, 7
      %v1656 = vsub.s32 1, %v1655
      %v1657 = vrot.slane %v1647, %v1656
      %vm1658 = vcmp.gt.f32.partialorder %v1514, %v1653
      %vm1659 = vcmp.gt.f32.partialorder %v1514, %v1657
      %vm1660 = vcmp.gt.f32.partialorder %v1518, %v1653
      %vm1661 = vcmp.gt.f32.partialorder %v1518, %v1657
      %vm1662 = vcmp.gt.f32.partialorder %v1522, %v1653
      %vm1663 = vcmp.gt.f32.partialorder %v1522, %v1657
      %vm1664 = vcmp.gt.f32.partialorder %v1526, %v1653
      %vm1665 = vcmp.gt.f32.partialorder %v1526, %v1657
      %vm1666 = vcmp.gt.f32.partialorder %v1530, %v1653
      %vm1667 = vcmp.gt.f32.partialorder %v1530, %v1657
      %vm1668 = vcmp.gt.f32.partialorder %v1534, %v1653
      %vm1669 = vcmp.gt.f32.partialorder %v1534, %v1657
      %vm1670 = vcmp.gt.f32.partialorder %v1538, %v1653
      %vm1671 = vcmp.gt.f32.partialorder %v1538, %v1657
      %vm1672 = vcmp.gt.f32.partialorder %v1542, %v1653
      %vm1673 = vcmp.gt.f32.partialorder %v1542, %v1657
      %vm1674 = vcmp.gt.f32.partialorder %v1546, %v1653
      %vm1675 = vcmp.gt.f32.partialorder %v1546, %v1657
      %vm1676 = vcmp.gt.f32.partialorder %v1550, %v1653
      %vm1677 = vcmp.gt.f32.partialorder %v1550, %v1657
      %vm1678 = vcmp.gt.f32.partialorder %v1554, %v1653
      %vm1679 = vcmp.gt.f32.partialorder %v1554, %v1657
      %vm1680 = vcmp.gt.f32.partialorder %v1558, %v1653
      %vm1681 = vcmp.gt.f32.partialorder %v1558, %v1657
      %vm1682 = vcmp.gt.f32.partialorder %v1562, %v1653
      %vm1683 = vcmp.gt.f32.partialorder %v1562, %v1657
      %vm1684 = vcmp.gt.f32.partialorder %v1566, %v1653
      %vm1685 = vcmp.gt.f32.partialorder %v1566, %v1657
      %vm1686 = vcmp.gt.f32.partialorder %v1570, %v1653
      %vm1687 = vcmp.gt.f32.partialorder %v1570, %v1657
      %vm1688 = vcmp.gt.f32.partialorder %v1574, %v1653
      %vm1689 = vcmp.gt.f32.partialorder %v1574, %v1657
      %vm1690 = vcmp.gt.f32.partialorder %v1578, %v1653
      %vm1691 = vcmp.gt.f32.partialorder %v1578, %v1657
      %vm1692 = vcmp.gt.f32.partialorder %v1582, %v1653
      %vm1693 = vcmp.gt.f32.partialorder %v1582, %v1657
      %vm1694 = vcmp.gt.f32.partialorder %v1586, %v1653
      %vm1695 = vcmp.gt.f32.partialorder %v1586, %v1657
      %vm1696 = vcmp.gt.f32.partialorder %v1590, %v1653
      %vm1697 = vcmp.gt.f32.partialorder %v1590, %v1657
      %vm1698 = vcmp.gt.f32.partialorder %v1594, %v1653
      %vm1699 = vcmp.gt.f32.partialorder %v1594, %v1657
      %vm1700 = vcmp.gt.f32.partialorder %v1598, %v1653
      %vm1701 = vcmp.gt.f32.partialorder %v1598, %v1657
      %vm1702 = vcmp.gt.f32.partialorder %v1602, %v1653
      %vm1703 = vcmp.gt.f32.partialorder %v1602, %v1657
      %vm1704 = vcmp.gt.f32.partialorder %v1606, %v1653
      %vm1705 = vcmp.gt.f32.partialorder %v1606, %v1657
      %vm1706 = vcmp.gt.f32.partialorder %v1610, %v1653
      %vm1707 = vcmp.gt.f32.partialorder %v1610, %v1657
      %vm1708 = vcmp.gt.f32.partialorder %v1614, %v1653
      %vm1709 = vcmp.gt.f32.partialorder %v1614, %v1657
      %vm1710 = vcmp.gt.f32.partialorder %v1618, %v1653
      %vm1711 = vcmp.gt.f32.partialorder %v1618, %v1657
      %vm1712 = vcmp.gt.f32.partialorder %v1622, %v1653
      %vm1713 = vcmp.gt.f32.partialorder %v1622, %v1657
      %vm1714 = vcmp.gt.f32.partialorder %v1626, %v1653
      %vm1715 = vcmp.gt.f32.partialorder %v1626, %v1657
      %vm1716 = vcmp.gt.f32.partialorder %v1630, %v1653
      %vm1717 = vcmp.gt.f32.partialorder %v1630, %v1657
      %vm1718 = vcmp.gt.f32.partialorder %v1634, %v1653
      %vm1719 = vcmp.gt.f32.partialorder %v1634, %v1657
      %vm1720 = vcmp.gt.f32.partialorder %v1638, %v1653
      %vm1721 = vcmp.gt.f32.partialorder %v1638, %v1657
      %vm1722 = vcmp.eq.f32.partialorder %v1514, %v1653
      %vm1723 = vcmp.eq.f32.partialorder %v1514, %v1657
      %vm1724 = vcmp.eq.f32.partialorder %v1518, %v1653
      %vm1725 = vcmp.eq.f32.partialorder %v1518, %v1657
      %vm1726 = vcmp.eq.f32.partialorder %v1522, %v1653
      %vm1727 = vcmp.eq.f32.partialorder %v1522, %v1657
      %vm1728 = vcmp.eq.f32.partialorder %v1526, %v1653
      %vm1729 = vcmp.eq.f32.partialorder %v1526, %v1657
      %vm1730 = vcmp.eq.f32.partialorder %v1530, %v1653
      %vm1731 = vcmp.eq.f32.partialorder %v1530, %v1657
      %vm1732 = vcmp.eq.f32.partialorder %v1534, %v1653
      %vm1733 = vcmp.eq.f32.partialorder %v1534, %v1657
      %vm1734 = vcmp.eq.f32.partialorder %v1538, %v1653
      %vm1735 = vcmp.eq.f32.partialorder %v1538, %v1657
      %vm1736 = vcmp.eq.f32.partialorder %v1542, %v1653
      %vm1737 = vcmp.eq.f32.partialorder %v1542, %v1657
      %vm1738 = vcmp.eq.f32.partialorder %v1546, %v1653
      %vm1739 = vcmp.eq.f32.partialorder %v1546, %v1657
      %vm1740 = vcmp.eq.f32.partialorder %v1550, %v1653
      %vm1741 = vcmp.eq.f32.partialorder %v1550, %v1657
      %vm1742 = vcmp.eq.f32.partialorder %v1554, %v1653
      %vm1743 = vcmp.eq.f32.partialorder %v1554, %v1657
      %vm1744 = vcmp.eq.f32.partialorder %v1558, %v1653
      %vm1745 = vcmp.eq.f32.partialorder %v1558, %v1657
      %vm1746 = vcmp.eq.f32.partialorder %v1562, %v1653
      %vm1747 = vcmp.eq.f32.partialorder %v1562, %v1657
      %vm1748 = vcmp.eq.f32.partialorder %v1566, %v1653
      %vm1749 = vcmp.eq.f32.partialorder %v1566, %v1657
      %vm1750 = vcmp.eq.f32.partialorder %v1570, %v1653
      %vm1751 = vcmp.eq.f32.partialorder %v1570, %v1657
      %vm1752 = vcmp.eq.f32.partialorder %v1574, %v1653
      %vm1753 = vcmp.eq.f32.partialorder %v1574, %v1657
      %vm1754 = vcmp.eq.f32.partialorder %v1578, %v1653
      %vm1755 = vcmp.eq.f32.partialorder %v1578, %v1657
      %vm1756 = vcmp.eq.f32.partialorder %v1582, %v1653
      %vm1757 = vcmp.eq.f32.partialorder %v1582, %v1657
      %vm1758 = vcmp.eq.f32.partialorder %v1586, %v1653
      %vm1759 = vcmp.eq.f32.partialorder %v1586, %v1657
      %vm1760 = vcmp.eq.f32.partialorder %v1590, %v1653
      %vm1761 = vcmp.eq.f32.partialorder %v1590, %v1657
      %vm1762 = vcmp.eq.f32.partialorder %v1594, %v1653
      %vm1763 = vcmp.eq.f32.partialorder %v1594, %v1657
      %vm1764 = vcmp.eq.f32.partialorder %v1598, %v1653
      %vm1765 = vcmp.eq.f32.partialorder %v1598, %v1657
      %vm1766 = vcmp.eq.f32.partialorder %v1602, %v1653
      %vm1767 = vcmp.eq.f32.partialorder %v1602, %v1657
      %vm1768 = vcmp.eq.f32.partialorder %v1606, %v1653
      %vm1769 = vcmp.eq.f32.partialorder %v1606, %v1657
      %vm1770 = vcmp.eq.f32.partialorder %v1610, %v1653
      %vm1771 = vcmp.eq.f32.partialorder %v1610, %v1657
      %vm1772 = vcmp.eq.f32.partialorder %v1614, %v1653
      %vm1773 = vcmp.eq.f32.partialorder %v1614, %v1657
      %vm1774 = vcmp.eq.f32.partialorder %v1618, %v1653
      %vm1775 = vcmp.eq.f32.partialorder %v1618, %v1657
      %vm1776 = vcmp.eq.f32.partialorder %v1622, %v1653
      %vm1777 = vcmp.eq.f32.partialorder %v1622, %v1657
      %vm1778 = vcmp.eq.f32.partialorder %v1626, %v1653
      %vm1779 = vcmp.eq.f32.partialorder %v1626, %v1657
      %vm1780 = vcmp.eq.f32.partialorder %v1630, %v1653
      %vm1781 = vcmp.eq.f32.partialorder %v1630, %v1657
      %vm1782 = vcmp.eq.f32.partialorder %v1634, %v1653
      %vm1783 = vcmp.eq.f32.partialorder %v1634, %v1657
      %vm1784 = vcmp.eq.f32.partialorder %v1638, %v1653
      %vm1785 = vcmp.eq.f32.partialorder %v1638, %v1657
      %vm1786 = vmand %vm1722, %vm715
      %vm1787 = vmand %vm1723, %vm716
      %vm1788 = vmand %vm1724, %vm717
      %vm1789 = vmand %vm1725, %vm718
      %vm1790 = vmand %vm1726, %vm719
      %vm1791 = vmand %vm1727, %vm720
      %vm1792 = vmand %vm1728, %vm721
      %vm1793 = vmand %vm1729, %vm722
      %vm1794 = vmand %vm1730, %vm723
      %vm1795 = vmand %vm1731, %vm724
      %vm1796 = vmand %vm1732, %vm725
      %vm1797 = vmand %vm1733, %vm726
      %vm1798 = vmand %vm1734, %vm727
      %vm1799 = vmand %vm1735, %vm728
      %vm1800 = vmand %vm1736, %vm729
      %vm1801 = vmand %vm1737, %vm730
      %vm1802 = vmand %vm1738, %vm731
      %vm1803 = vmand %vm1739, %vm732
      %vm1804 = vmand %vm1740, %vm733
      %vm1805 = vmand %vm1741, %vm734
      %vm1806 = vmand %vm1742, %vm735
      %vm1807 = vmand %vm1743, %vm736
      %vm1808 = vmand %vm1744, %vm737
      %vm1809 = vmand %vm1745, %vm738
      %vm1810 = vmand %vm1746, %vm739
      %vm1811 = vmand %vm1747, %vm740
      %vm1812 = vmand %vm1748, %vm741
      %vm1813 = vmand %vm1749, %vm742
      %vm1814 = vmand %vm1750, %vm743
      %vm1815 = vmand %vm1751, %vm744
      %vm1816 = vmand %vm1752, %vm745
      %vm1817 = vmand %vm1753, %vm746
      %vm1818 = vmand %vm1754, %vm747
      %vm1819 = vmand %vm1755, %vm748
      %vm1820 = vmand %vm1756, %vm749
      %vm1821 = vmand %vm1757, %vm750
      %vm1822 = vmand %vm1758, %vm751
      %vm1823 = vmand %vm1759, %vm752
      %vm1824 = vmand %vm1760, %vm753
      %vm1825 = vmand %vm1761, %vm754
      %vm1826 = vmand %vm1762, %vm755
      %vm1827 = vmand %vm1763, %vm756
      %vm1828 = vmand %vm1764, %vm757
      %vm1829 = vmand %vm1765, %vm758
      %vm1830 = vmand %vm1766, %vm759
      %vm1831 = vmand %vm1767, %vm760
      %vm1832 = vmand %vm1768, %vm761
      %vm1833 = vmand %vm1769, %vm762
      %vm1834 = vmand %vm1770, %vm763
      %vm1835 = vmand %vm1771, %vm764
      %vm1836 = vmand %vm1772, %vm765
      %vm1837 = vmand %vm1773, %vm766
      %vm1838 = vmand %vm1774, %vm767
      %vm1839 = vmand %vm1775, %vm768
      %vm1840 = vmand %vm1776, %vm769
      %vm1841 = vmand %vm1777, %vm770
      %vm1842 = vmand %vm1778, %vm771
      %vm1843 = vmand %vm1779, %vm772
      %vm1844 = vmand %vm1780, %vm773
      %vm1845 = vmand %vm1781, %vm774
      %vm1846 = vmand %vm1782, %vm775
      %vm1847 = vmand %vm1783, %vm776
      %vm1848 = vmand %vm1784, %vm777
      %vm1849 = vmand %vm1785, %vm778
      %vm1850 = vmor %vm1658, %vm1786
      %vm1851 = vmor %vm1659, %vm1787
      %vm1852 = vmor %vm1660, %vm1788
      %vm1853 = vmor %vm1661, %vm1789
      %vm1854 = vmor %vm1662, %vm1790
      %vm1855 = vmor %vm1663, %vm1791
      %vm1856 = vmor %vm1664, %vm1792
      %vm1857 = vmor %vm1665, %vm1793
      %vm1858 = vmor %vm1666, %vm1794
      %vm1859 = vmor %vm1667, %vm1795
      %vm1860 = vmor %vm1668, %vm1796
      %vm1861 = vmor %vm1669, %vm1797
      %vm1862 = vmor %vm1670, %vm1798
      %vm1863 = vmor %vm1671, %vm1799
      %vm1864 = vmor %vm1672, %vm1800
      %vm1865 = vmor %vm1673, %vm1801
      %vm1866 = vmor %vm1674, %vm1802
      %vm1867 = vmor %vm1675, %vm1803
      %vm1868 = vmor %vm1676, %vm1804
      %vm1869 = vmor %vm1677, %vm1805
      %vm1870 = vmor %vm1678, %vm1806
      %vm1871 = vmor %vm1679, %vm1807
      %vm1872 = vmor %vm1680, %vm1808
      %vm1873 = vmor %vm1681, %vm1809
      %vm1874 = vmor %vm1682, %vm1810
      %vm1875 = vmor %vm1683, %vm1811
      %vm1876 = vmor %vm1684, %vm1812
      %vm1877 = vmor %vm1685, %vm1813
      %vm1878 = vmor %vm1686, %vm1814
      %vm1879 = vmor %vm1687, %vm1815
      %vm1880 = vmor %vm1688, %vm1816
      %vm1881 = vmor %vm1689, %vm1817
      %vm1882 = vmor %vm1690, %vm1818
      %vm1883 = vmor %vm1691, %vm1819
      %vm1884 = vmor %vm1692, %vm1820
      %vm1885 = vmor %vm1693, %vm1821
      %vm1886 = vmor %vm1694, %vm1822
      %vm1887 = vmor %vm1695, %vm1823
      %vm1888 = vmor %vm1696, %vm1824
      %vm1889 = vmor %vm1697, %vm1825
      %vm1890 = vmor %vm1698, %vm1826
      %vm1891 = vmor %vm1699, %vm1827
      %vm1892 = vmor %vm1700, %vm1828
      %vm1893 = vmor %vm1701, %vm1829
      %vm1894 = vmor %vm1702, %vm1830
      %vm1895 = vmor %vm1703, %vm1831
      %vm1896 = vmor %vm1704, %vm1832
      %vm1897 = vmor %vm1705, %vm1833
      %vm1898 = vmor %vm1706, %vm1834
      %vm1899 = vmor %vm1707, %vm1835
      %vm1900 = vmor %vm1708, %vm1836
      %vm1901 = vmor %vm1709, %vm1837
      %vm1902 = vmor %vm1710, %vm1838
      %vm1903 = vmor %vm1711, %vm1839
      %vm1904 = vmor %vm1712, %vm1840
      %vm1905 = vmor %vm1713, %vm1841
      %vm1906 = vmor %vm1714, %vm1842
      %vm1907 = vmor %vm1715, %vm1843
      %vm1908 = vmor %vm1716, %vm1844
      %vm1909 = vmor %vm1717, %vm1845
      %vm1910 = vmor %vm1718, %vm1846
      %vm1911 = vmor %vm1719, %vm1847
      %vm1912 = vmor %vm1720, %vm1848
      %vm1913 = vmor %vm1721, %vm1849
      %v1914 = vsel %vm1850, 1.0, 0.0
      %v1915 = vsel %vm1851, 1.0, 0.0
      %v1916 = vsel %vm1852, 1.0, 0.0
      %v1917 = vsel %vm1853, 1.0, 0.0
      %v1918 = vsel %vm1854, 1.0, 0.0
      %v1919 = vsel %vm1855, 1.0, 0.0
      %v1920 = vsel %vm1856, 1.0, 0.0
      %v1921 = vsel %vm1857, 1.0, 0.0
      %v1922 = vsel %vm1858, 1.0, 0.0
      %v1923 = vsel %vm1859, 1.0, 0.0
      %v1924 = vsel %vm1860, 1.0, 0.0
      %v1925 = vsel %vm1861, 1.0, 0.0
      %v1926 = vsel %vm1862, 1.0, 0.0
      %v1927 = vsel %vm1863, 1.0, 0.0
      %v1928 = vsel %vm1864, 1.0, 0.0
      %v1929 = vsel %vm1865, 1.0, 0.0
      %v1930 = vsel %vm1866, 1.0, 0.0
      %v1931 = vsel %vm1867, 1.0, 0.0
      %v1932 = vsel %vm1868, 1.0, 0.0
      %v1933 = vsel %vm1869, 1.0, 0.0
      %v1934 = vsel %vm1870, 1.0, 0.0
      %v1935 = vsel %vm1871, 1.0, 0.0
      %v1936 = vsel %vm1872, 1.0, 0.0
      %v1937 = vsel %vm1873, 1.0, 0.0
      %v1938 = vsel %vm1874, 1.0, 0.0
      %v1939 = vsel %vm1875, 1.0, 0.0
      %v1940 = vsel %vm1876, 1.0, 0.0
      %v1941 = vsel %vm1877, 1.0, 0.0
      %v1942 = vsel %vm1878, 1.0, 0.0
      %v1943 = vsel %vm1879, 1.0, 0.0
      %v1944 = vsel %vm1880, 1.0, 0.0
      %v1945 = vsel %vm1881, 1.0, 0.0
      %v1946 = vsel %vm1882, 1.0, 0.0
      %v1947 = vsel %vm1883, 1.0, 0.0
      %v1948 = vsel %vm1884, 1.0, 0.0
      %v1949 = vsel %vm1885, 1.0, 0.0
      %v1950 = vsel %vm1886, 1.0, 0.0
      %v1951 = vsel %vm1887, 1.0, 0.0
      %v1952 = vsel %vm1888, 1.0, 0.0
      %v1953 = vsel %vm1889, 1.0, 0.0
      %v1954 = vsel %vm1890, 1.0, 0.0
      %v1955 = vsel %vm1891, 1.0, 0.0
      %v1956 = vsel %vm1892, 1.0, 0.0
      %v1957 = vsel %vm1893, 1.0, 0.0
      %v1958 = vsel %vm1894, 1.0, 0.0
      %v1959 = vsel %vm1895, 1.0, 0.0
      %v1960 = vsel %vm1896, 1.0, 0.0
      %v1961 = vsel %vm1897, 1.0, 0.0
      %v1962 = vsel %vm1898, 1.0, 0.0
      %v1963 = vsel %vm1899, 1.0, 0.0
      %v1964 = vsel %vm1900, 1.0, 0.0
      %v1965 = vsel %vm1901, 1.0, 0.0
      %v1966 = vsel %vm1902, 1.0, 0.0
      %v1967 = vsel %vm1903, 1.0, 0.0
      %v1968 = vsel %vm1904, 1.0, 0.0
      %v1969 = vsel %vm1905, 1.0, 0.0
      %v1970 = vsel %vm1906, 1.0, 0.0
      %v1971 = vsel %vm1907, 1.0, 0.0
      %v1972 = vsel %vm1908, 1.0, 0.0
      %v1973 = vsel %vm1909, 1.0, 0.0
      %v1974 = vsel %vm1910, 1.0, 0.0
      %v1975 = vsel %vm1911, 1.0, 0.0
      %v1976 = vsel %vm1912, 1.0, 0.0
      %v1977 = vsel %vm1913, 1.0, 0.0
      %v1978 = vpack.c.bf16 %v1916, %v1914
      %v1979 = vpack.c.bf16 %v1917, %v1915
      %v1980 = vpack.c.bf16 %v1920, %v1918
      %v1981 = vpack.c.bf16 %v1921, %v1919
      %v1982 = vpack.c.bf16 %v1924, %v1922
      %v1983 = vpack.c.bf16 %v1925, %v1923
      %v1984 = vpack.c.bf16 %v1928, %v1926
      %v1985 = vpack.c.bf16 %v1929, %v1927
      %v1986 = vpack.c.bf16 %v1932, %v1930
      %v1987 = vpack.c.bf16 %v1933, %v1931
      %v1988 = vpack.c.bf16 %v1936, %v1934
      %v1989 = vpack.c.bf16 %v1937, %v1935
      %v1990 = vpack.c.bf16 %v1940, %v1938
      %v1991 = vpack.c.bf16 %v1941, %v1939
      %v1992 = vpack.c.bf16 %v1944, %v1942
      %v1993 = vpack.c.bf16 %v1945, %v1943
      %v1994 = vpack.c.bf16 %v1948, %v1946
      %v1995 = vpack.c.bf16 %v1949, %v1947
      %v1996 = vpack.c.bf16 %v1952, %v1950
      %v1997 = vpack.c.bf16 %v1953, %v1951
      %v1998 = vpack.c.bf16 %v1956, %v1954
      %v1999 = vpack.c.bf16 %v1957, %v1955
      %v2000 = vpack.c.bf16 %v1960, %v1958
      %v2001 = vpack.c.bf16 %v1961, %v1959
      %v2002 = vpack.c.bf16 %v1964, %v1962
      %v2003 = vpack.c.bf16 %v1965, %v1963
      %v2004 = vpack.c.bf16 %v1968, %v1966
      %v2005 = vpack.c.bf16 %v1969, %v1967
      %v2006 = vpack.c.bf16 %v1972, %v1970
      %v2007 = vpack.c.bf16 %v1973, %v1971
      %v2008 = vpack.c.bf16 %v1976, %v1974
      %v2009 = vpack.c.bf16 %v1977, %v1975
      %v2010 = vlaneseq
      %v2011 = vshrl.u32 %v2010, 7
      %v2012 = vsub.s32 1, %v2011
      %v2013 = vrot.slane %v451, %v2012
      %v2014 = vlaneseq
      %v2015 = vshrl.u32 %v2014, 7
      %v2016 = vsub.s32 3, %v2015
      %v2017 = vrot.slane %v451, %v2016
      %v2020 = vlaneseq
      %v2021 = vshrl.u32 %v2020, 7
      %v2022 = vsub.s32 1, %v2021
      %v2023 = vrot.slane %v2013, %v2022
      %v2024 = vlaneseq
      %v2025 = vshrl.u32 %v2024, 7
      %v2026 = vsub.s32 1, %v2025
      %v2027 = vrot.slane %v2017, %v2026
      %v2028 = vsel %vm1312, %v2023, %v780
      %v2029 = vsel %vm1312, %v2027, %v780
      %v2030 = vpack.c.bf16 %v2028, %v2028
      %v2031 = vpack.c.bf16 %v2029, %v2029
      %2032 = vmatprep.subr.bf16.mxu0 %v1993
      %2033 = vmatpush1.bf16.msra.mxu0 %v1992
      %2034 = vmatprep.subr.bf16.mxu0 %v1991
      %2035 = vmatpush1.bf16.msra.mxu0 %v1990
      %2036 = vmatprep.subr.bf16.mxu0 %v1989
      %2037 = vmatpush1.bf16.msra.mxu0 %v1988
      %2038 = vmatprep.subr.bf16.mxu0 %v1987
      %2039 = vmatpush1.bf16.msra.mxu0 %v1986
      %2040 = vmatprep.subr.bf16.mxu0 %v1985
      %2041 = vmatpush1.bf16.msra.mxu0 %v1984
      %2042 = vmatprep.subr.bf16.mxu0 %v1983
      %2043 = vmatpush1.bf16.msra.mxu0 %v1982
      %2044 = vmatprep.subr.bf16.mxu0 %v1981
      %2045 = vmatpush1.bf16.msra.mxu0 %v1980
      %2046 = vmatprep.subr.bf16.mxu0 %v1979
      %2047 = vmatpush1.bf16.msra.mxu0 %v1978
      %2048 = vmatprep.subr.bf16.mxu0 %v2009
      %2049 = vmatpush2.bf16.msra.mxu0 %v2008
      %2050 = vmatprep.subr.bf16.mxu0 %v2007
      %2051 = vmatpush2.bf16.msra.mxu0 %v2006
      %2052 = vmatprep.subr.bf16.mxu0 %v2005
      %2053 = vmatpush2.bf16.msra.mxu0 %v2004
      %2054 = vmatprep.subr.bf16.mxu0 %v2003
      %2055 = vmatpush2.bf16.msra.mxu0 %v2002
      %2056 = vmatprep.subr.bf16.mxu0 %v2001
      %2057 = vmatpush2.bf16.msra.mxu0 %v2000
      %2058 = vmatprep.subr.bf16.mxu0 %v1999
      %2059 = vmatpush2.bf16.msra.mxu0 %v1998
      %2060 = vmatprep.subr.bf16.mxu0 %v1997
      %2061 = vmatpush2.bf16.msra.mxu0 %v1996
      %2062 = vmatprep.subr.bf16.mxu0 %v1995
      %2063 = vmatpush2.bf16.msra.mxu0 %v1994
      %2064 = vmatprep.mubr.bf16.mxu0 %v2031
      %2065 = vmatmul.mubr.bf16.gmra.mxu0 %v2030
      %v2066 = vpop.f32.mrf.mxu0
      %v2067 = vadd.f32 0.0, %v2066
      %v2068 = vpop.f32.mrf.mxu0
      %v2069 = vadd.f32 0.0, %v2068
      %v2070 = vpop.f32.mrf.mxu0
      %v2071 = vpop.f32.mrf.mxu0
      %2072 = vdwg.mxu0
      %v2073 = vsel %vm1377, %v2013, 0.0
      %v2074 = vsel %vm1377, %v2017, 0.0
      %v2075 = vadd.f32 %v2073, %v2074
      %2076 = vadd.xlane.f32.xlu0 %v2075
      %v2077 = vpop.xlane.xlu0 %2076
      %v2078 = vrot.slane %v2077, 4
      %v2079 = vadd.f32 %v2077, %v2078
      %v2080 = vrot.slane %v2079, 2
      %v2081 = vadd.f32 %v2079, %v2080
      %v2082 = vrot.slane %v2081, 1
      %v2083 = vadd.f32 %v2081, %v2082
      %s2084 = vtos %v2083
      %v2085 = vstv %s2084
      %v2086 = vsub.f32 %v2085, %v2067
      %v2087 = vsub.f32 %v2085, %v2069
      %v2090 = vrot.slane %v2067, 1
      %v2091 = vrot.slane %v2069, 1
      %v2094 = vsub.f32 %v2067, %v2090
      %v2095 = vsub.f32 %v2069, %v2091
      %v2096 = vadd.f32 %v2085, %v2094
      %v2097 = vadd.f32 %v2085, %v2095
      %v2100 = vrot.slane %v2096, 7
      %v2101 = vrot.slane %v2097, 7
      %v2104 = vrcp.pop %v2100
      %v2105 = vmul.f32 %v2086, %v2104
      %v2106 = vrcp.pop %v2101
      %v2107 = vmul.f32 %v2087, %v2106
      %v2108 = vsub.f32 1.0, %v2105
      %v2109 = vsub.f32 1.0, %v2107
      %v2110 = vsub.f32 %v2067, %v2013
      %v2111 = vsub.f32 %v2069, %v2017
      %vm2112 = vcmp.gt.f32.partialorder %v2067, 1.5
      %vm2113 = vcmp.gt.f32.partialorder %v2069, 1.5
      %v2114 = vsub.f32 %v2067, 1.0
      %v2115 = vsub.f32 %v2069, 1.0
      %v2118 = vrot.slane %v2110, 1
      %v2119 = vrot.slane %v2111, 1
      %v2122 = vsub.f32 %v2114, %v2118
      %v2123 = vsub.f32 %v2115, %v2119
      %v2124 = vadd.f32 %v2085, %v2122
      %v2125 = vadd.f32 %v2085, %v2123
      %v2126 = vsel %vm2112, %v2124, 1.0
      %v2127 = vsel %vm2113, %v2125, 1.0
      %v2128 = vsub.f32 %v2085, %v2110
      %v2129 = vsub.f32 %v2085, %v2111
      %v2132 = vrot.slane %v2126, 7
      %v2133 = vrot.slane %v2127, 7
      %v2136 = vrcp.pop %v2132
      %v2137 = vmul.f32 %v2128, %v2136
      %v2138 = vrcp.pop %v2133
      %v2139 = vmul.f32 %v2129, %v2138
      %v2140 = vsub.f32 1.0, %v2137
      %v2141 = vsub.f32 1.0, %v2139
      %v2144 = vrot.slane %v2140, 1
      %v2145 = vrot.slane %v2141, 1
      %v2148 = vsel %vm2112, %v2144, 0.0
      %v2149 = vsel %vm2113, %v2145, 0.0
      %v2152 = vrot.slane %v2148, 7
      %v2153 = vrot.slane %v2149, 7
      %v2156 = vsub.f32 %v2108, %v2152
      %v2157 = vsub.f32 %v2109, %v2153
      %v2160 = vcombine.low %v2156, %v2157
      %v2162 = vunpack.c.l.s4 1983009808
      %v2163 = vunpack.c.0.s8 %v2162
      %v2164 = vlaneseq
      %v2165 = vshrl.u32 %v2164, 7
      %v2166 = vsub.s32 %v2163, %v2165
      %v2167 = vrot.slane %v2160, %v2166
      %v2169 = vmul.f32 %v1463, %v2167
      %v2171 = vlaneseq
      %v2172 = vshrl.u32 %v2171, 7
      %v2173 = vsub.s32 1, %v2172
      %v2174 = vrot.slane %v2169, %v2173
      %v2175 = vlaneseq
      %v2176 = vshrl.u32 %v2175, 7
      %v2177 = vsub.s32 3, %v2176
      %v2178 = vrot.slane %v2169, %v2177
      %v2181 = vsel %vm1377, %v2174, 0.0
      %v2182 = vsel %vm1377, %v2178, 0.0
      %v2183 = vadd.f32 %v2181, %v2182
      %2184 = vadd.xlane.f32.xlu0 %v2183
      %v2185 = vpop.xlane.xlu0 %2184
      %v2186 = vrot.slane %v2185, 4
      %v2187 = vadd.f32 %v2185, %v2186
      %v2188 = vrot.slane %v2187, 2
      %v2189 = vadd.f32 %v2187, %v2188
      %v2190 = vrot.slane %v2189, 1
      %v2191 = vadd.f32 %v2189, %v2190
      %s2192 = vtos %v2191
      %p2193 = scmp.gt.f32.partialorder %s2084, 0.0
      %s2194 = scalar_select %p2193, 1, 0
      %s2195 = scvt.s32.f32 %s2194
      %vm2196 = vcmp.eq.s32.totalorder %v713, 1
      %s2197 = smul.f32 %s2195, %s2192
      %v2198 = vstv %s2197
      %v2199 = vsel %vm2196, %v2198, 0.0
      %v2200 = vadd.f32 %v1508, %v2199
      %v2201 = vstv %s2195
      %v2202 = vsel %vm2196, %v2201, 0.0
      %v2203 = vadd.f32 %v1511, %v2202
      %vm2204 = vcmask 8192
      %2205 = vst.msk [vmem:[%s339] sm:$0x1] %vm2204, %v2200
      %2206 = vst.msk [vmem:[%s345] sm:$0x1] %vm2204, %v2203
      %p2207 = scmp.lt.s32.totalorder %s22, 3
      %s2208 = scalar_select %p2207, %s22, 3
      %p2209 = scmp.lt.s32.totalorder %s21, 0
      %s2210 = scalar_select %p2209, %s21, 0
      %s2211 = sadd.s32 %s2210, %s2208
      %s2212 = scalar_lea.vmem %s4, %s2211
      %p2213 = scmp.lt.s32.totalorder %s22, 3
      %s2214 = scalar_select %p2213, %s22, 3
      %p2215 = scmp.lt.s32.totalorder %s21, 0
      %s2216 = scalar_select %p2215, %s21, 0
      %s2217 = sadd.s32 %s2216, %s2214
      %s2218 = scalar_lea.vmem %s5, %s2217
      // Predicated region
      $region37: #{lovasz_loss.1} parent=35 // pred_check
        %p2219 = pneg %p157
      $region38: #{lovasz_loss.1} parent=35 // pred_check_branch
        %2221 = sbr.rel (%p2219) target = $region40
      $region39: #{lovasz_loss.1} parent=35 // pred_region
        _
      $region40: #{lovasz_loss.1} parent=35 // pred_fallthru
        _
      // Predicated region
      $region41: #{lovasz_loss.1} parent=35 // pred_check
        %p2222 = pneg %p185
      $region42: #{lovasz_loss.1} parent=35 // pred_check_branch
        %2224 = sbr.rel (%p2222) target = $region44
      $region43: #{lovasz_loss.1} parent=35 // pred_region
        _
      $region44: #{lovasz_loss.1} parent=35 // pred_fallthru
        _
    $region36: #{lovasz_loss.1} parent=5 // pred_fallthru
      _
    %p2225 = scmp.le.s32.totalorder 2, %s12
    // Predicated region
    $region45: #{lovasz_loss.1} parent=5 // pred_check
      %p2226 = pneg %p2225
    $region46: #{lovasz_loss.1} parent=5 // pred_check_branch
      %2228 = sbr.rel (%p2226) target = $region48
    $region47: #{lovasz_loss.1} parent=5 // pred_region
      %s2229 = ssub.s32 %s12, 2
      // Predicated region
      $region49: #{lovasz_loss.1} parent=47 // pred_check
        %p2230 = pneg %p163
      $region50: #{lovasz_loss.1} parent=47 // pred_check_branch
        %2232 = sbr.rel (%p2230) target = $region52
      $region51: #{lovasz_loss.1} parent=47 // pred_region
        %p2233 = scmp.lt.s32.totalorder %s24, 3
        %s2234 = scalar_select %p2233, %s24, 3
        %p2235 = scmp.lt.s32.totalorder %s23, 0
        %s2236 = scalar_select %p2235, %s23, 0
        %s2237 = sadd.s32 %s2236, %s2234
        %s2238 = scalar_lea.vmem %s4, %s2237
      $region52: #{lovasz_loss.1} parent=47 // pred_fallthru
        _
      // Predicated region
      $region53: #{lovasz_loss.1} parent=47 // pred_check
        %p2239 = pneg %p191
      $region54: #{lovasz_loss.1} parent=47 // pred_check_branch
        %2241 = sbr.rel (%p2239) target = $region56
      $region55: #{lovasz_loss.1} parent=47 // pred_region
        %p2242 = scmp.lt.s32.totalorder %s24, 3
        %s2243 = scalar_select %p2242, %s24, 3
        %p2244 = scmp.lt.s32.totalorder %s23, 0
        %s2245 = scalar_select %p2244, %s23, 0
        %s2246 = sadd.s32 %s2245, %s2243
        %s2247 = scalar_lea.vmem %s5, %s2246
      $region56: #{lovasz_loss.1} parent=47 // pred_fallthru
        _
    $region48: #{lovasz_loss.1} parent=5 // pred_fallthru
      _
  $region6: #{lovasz_loss.1} parent=0 // loop_footer
    %s16 = sadd.s32 1, %s12
  $region7: #{lovasz_loss.1} parent=0 // loop_footer_branch
    %11 = sbr.rel target = $region3
  $region8: #{lovasz_loss.1} parent=0 // loop_exit
    _

</llo_original>
